<compile_context>
chip_gen: v7x
topology: tpu7x:2x2x1
jax: 0.10.0
libtpu: 0.0.40
codegen_flags: <defaults>
</compile_context>

<pallas_src>
import numpy as np
import jax
import jax.numpy as jnp
from jax.experimental import pallas as pl
from jax.experimental.pallas import tpu as pltpu


def _cdiv(a, b):
    return -(-a // b)


def _round_up(a, b):
    return _cdiv(a, b) * b


def make_position_encoder(input_channels: int = 3,
                          num_freqs: int = 10,
                          log_scale: bool = True,
                          out_dtype=None,
                          use_phase_trick: bool = True,
                          target_block_out_bytes: int = 2 * 1024 * 1024,
                          vmem_limit_bytes: int = 32 * 1024 * 1024):
    """Returns (apply_fn, output_channels).

    apply_fn(x[..., C]) -> y[..., C*(2*num_freqs+1)] in the exact torch order
    torch.cat([x, sin(f0 x), cos(f0 x), sin(f1 x), cos(f1 x), ...], -1).
    """
    C = int(input_channels)
    F = int(num_freqs)
    assert C >= 1 and F >= 1
    K = 2 * F + 1
    OC = C * K                      # output channels per point

    if log_scale:
        freqs = 2.0 ** np.linspace(0.0, F - 1, F)
    else:
        freqs = np.linspace(1.0, 2.0 ** (F - 1), F)
    freqs = np.asarray(freqs, np.float64)

    # Per-output-lane constants (one point, un-packed):
    #   w_base[c, j] : coefficient of x[..., c] for output lane j (0 elsewhere)
    #   phase[j]     : +pi/2 on cos lanes (cos t == sin(t + pi/2)), 0 otherwise
    #   is_x[j]      : 1.0 on the C passthrough lanes
    #   is_cos[j]    : 1.0 on cos lanes (only used when use_phase_trick=False)
    w_base = np.zeros((C, OC), np.float32)
    phase = np.zeros((OC,), np.float32)
    is_x = np.zeros((OC,), np.float32)
    is_cos = np.zeros((OC,), np.float32)
    for c in range(C):
        w_base[c, c] = 1.0
        is_x[c] = 1.0
    for i in range(F):
        for t in range(2):                       # 0 -> sin, 1 -> cos
            base = C * (1 + 2 * i + t)
            for c in range(C):
                w_base[c, base + c] = np.float32(freqs[i])
                if t == 1:
                    phase[base + c] = np.float32(0.5 * np.pi)
                    is_cos[base + c] = 1.0

    def kernel(x_ref, w_ref, aux_ref, o_ref):
        # x_ref  : [tr, G*C]    G points (C channels each) packed per row
        # w_ref  : [G*C, G*OC]  block-diagonal frequency / scatter matrix
        # aux_ref: [3, G*OC]    rows: phase, is_x mask, is_cos mask
        # o_ref  : [tr, G*OC]   torch-ordered interleaved output rows
        x = x_ref[...].astype(jnp.float32)
        # Tiny matmul on the otherwise idle MXU: scatters channels to their
        # output lanes and applies the per-lane frequency in one shot.
        a = jnp.dot(x, w_ref[...],
                    preferred_element_type=jnp.float32,
                    precision=jax.lax.Precision.HIGHEST)
        passthrough = jnp.broadcast_to(aux_ref[1:2, :], a.shape) != 0.0
        if use_phase_trick:
            trig = jnp.sin(a + aux_ref[0:1, :])          # cos lanes via +pi/2
        else:
            cos_lane = jnp.broadcast_to(aux_ref[2:3, :], a.shape) != 0.0
            trig = jnp.where(cos_lane, jnp.cos(a), jnp.sin(a))
        o_ref[...] = jnp.where(passthrough, a, trig).astype(o_ref.dtype)

    packed_cache = {}

    def _packed_consts(G):
        if G not in packed_cache:
            W = np.zeros((G * C, G * OC), np.float32)
            for g in range(G):
                W[g * C:(g + 1) * C, g * OC:(g + 1) * OC] = w_base
            aux = np.stack([np.tile(phase, G),
                            np.tile(is_x, G),
                            np.tile(is_cos, G)]).astype(np.float32)
            packed_cache[G] = (jnp.asarray(W), jnp.asarray(aux))
        return packed_cache[G]

    def _pick_group(P):
        # Pack G points per row so G*OC lanes are as 128-dense as possible.
        best, best_score = 1, -1.0
        for g in range(1, 9):
            if P % g:
                continue
            width = g * OC
            density = width / float(_round_up(width, 128))
            score = density + 0.01 * g           # prefer larger G on ties
            if score > best_score:
                best, best_score = g, score
        return best

    def apply(x):
        assert x.shape[-1] == C, (x.shape, C)
        lead = x.shape[:-1]
        P = int(np.prod(lead)) if lead else 1
        odt = jnp.dtype(out_dtype) if out_dtype is not None else jnp.dtype(x.dtype)

        G = _pick_group(P)
        rows = P // G
        GC, GW = G * C, G * OC
        w_arr, aux_arr = _packed_consts(G)

        out_row_bytes = _round_up(GW, 128) * odt.itemsize      # VMEM lane padding
        in_row_bytes = _round_up(GC, 128) * 4
        # ~2 MiB output blocks: pipeline-efficient, bounded full-tile temps.
        tr = max(8, (target_block_out_bytes // out_row_bytes) // 8 * 8)
        # Keep double-buffered in+out blocks far below the scoped-VMEM limit
        # (leaves headroom for elementwise temporaries / compiler scratch).
        while tr > 8 and 2 * tr * (out_row_bytes + in_row_bytes) > vmem_limit_bytes // 2:
            tr //= 2
        tr = max(8, tr // 8 * 8)
        # >= ~4 grid steps when possible: lets ("parallel",) split across the
        # two v7x TensorCores and gives the DMA pipeline steps to overlap.
        tr = min(tr, max(8, _round_up(_cdiv(rows, 4), 8)))
        grid_n = _cdiv(rows, tr)                 # partial last block allowed

        xg = x.reshape(rows, GC)                 # contiguous -> metadata only
        out = pl.pallas_call(
            kernel,
            out_shape=jax.ShapeDtypeStruct((rows, GW), odt),
            grid=(grid_n,),
            in_specs=[
                pl.BlockSpec((tr, GC), lambda i: (i, 0)),
                pl.BlockSpec((GC, GW), lambda i: (0, 0)),
                pl.BlockSpec((3, GW), lambda i: (0, 0)),
            ],
            out_specs=pl.BlockSpec((tr, GW), lambda i: (i, 0)),
            compiler_params=pltpu.CompilerParams(
                dimension_semantics=("parallel",),
                vmem_limit_bytes=vmem_limit_bytes),
        )(xg, w_arr, aux_arr)

        return out.reshape(*lead, OC)            # contiguous -> metadata only

    return apply, OC


def position_encoder_ref(x, num_freqs=10, log_scale=True):
    """Pure-JAX reference mirroring the PyTorch forward exactly."""
    if log_scale:
        freqs = 2.0 ** np.linspace(0.0, num_freqs - 1, num_freqs)
    else:
        freqs = np.linspace(1.0, 2.0 ** (num_freqs - 1), num_freqs)
    outs = [x]
    for f in freqs:
        f32 = np.float32(f)
        outs.append(jnp.sin(f32 * x))
        outs.append(jnp.cos(f32 * x))
    return jnp.concatenate(outs, axis=-1)


if __name__ == "__main__":
    C = 3
    key = jax.random.PRNGKey(0)
    # Normalised NeRF-style coordinates in [-1, 1): batch=2, 64 points, 3 ch.
    x = jax.random.uniform(key, (2, 64, C), dtype=jnp.float32,
                           minval=-1.0, maxval=1.0)

    # 1) Module defaults: num_freqs=10, log_scale=True (fast phase-trick path).
    #    Tolerance covers f32 range-reduction / phase-rounding at |arg| <= 512.
    enc, oc = make_position_encoder(C, num_freqs=10, log_scale=True)
    y = enc(x)
    jax.block_until_ready(y)
    ref = position_encoder_ref(x, 10, True)
    assert y.shape == (2, 64, oc) and oc == C * (2 * 10 + 1)
    np.testing.assert_allclose(np.asarray(y), np.asarray(ref),
                               rtol=2e-3, atol=2e-3)

    # 2) Exact-trig variant (direct cos(), no sin(.+pi/2) rewrite).
    enc_e, _ = make_position_encoder(C, 10, True, use_phase_trick=False)
    y_e = enc_e(x)
    jax.block_until_ready(y_e)
    np.testing.assert_allclose(np.asarray(y_e), np.asarray(ref),
                               rtol=2e-3, atol=2e-3)

    # 3) Linear frequency bands (log_scale=False), same kernel.
    enc_l, _ = make_position_encoder(C, 4, False)
    y_l = enc_l(x)
    jax.block_until_ready(y_l)
    np.testing.assert_allclose(np.asarray(y_l),
                               np.asarray(position_encoder_ref(x, 4, False)),
                               rtol=1e-4, atol=1e-4)

    # 4) Ragged point count: exercises the partial last grid block (no padding).
    x_r = jax.random.uniform(jax.random.PRNGKey(0), (2, 50, C),
                             dtype=jnp.float32, minval=-1.0, maxval=1.0)
    enc_r, oc_r = make_position_encoder(C, 4, True)
    y_r = enc_r(x_r)
    jax.block_until_ready(y_r)
    assert y_r.shape == (2, 50, oc_r)
    np.testing.assert_allclose(np.asarray(y_r),
                               np.asarray(position_encoder_ref(x_r, 4, True)),
                               rtol=1e-4, atol=1e-4)

    # 5) bf16 output (halves HBM write traffic); the x passthrough is also
    #    bf16 -- documented deviation from torch.cat dtype semantics.
    enc_b, _ = make_position_encoder(C, 4, True, out_dtype=jnp.bfloat16)
    y_b = enc_b(x)
    jax.block_until_ready(y_b)
    assert y_b.dtype == jnp.bfloat16
    np.testing.assert_allclose(np.asarray(y_b, dtype=np.float32),
                               np.asarray(position_encoder_ref(x, 4, True)),
                               rtol=3e-2, atol=3e-2)

    print("KERNEL_OK")
</pallas_src>

<mosaic_0001>
module attributes {stable_mosaic.version = 11 : i64} {
  func.func @kernel(%arg0: i32, %arg1: memref<8x24xf32, #tpu.memory_space<vmem>>, %arg2: memref<24x504xf32, #tpu.memory_space<vmem>>, %arg3: memref<3x504xf32, #tpu.memory_space<vmem>>, %arg4: memref<8x504xf32, #tpu.memory_space<vmem>>) attributes {dimension_semantics = [#tpu.dimension_semantics<parallel>], iteration_bounds = array<i64: 2>, scalar_prefetch = 0 : i64, scratch_operands = 0 : i64, tpu.core_type = #tpu.core_type<tc>, window_params = [{transform_indices = @transform_0, window_bounds = array<i64: 8, 24>}, {pipeline_mode = #tpu.pipeline_mode<synchronous>, transform_indices = @transform_1, window_bounds = array<i64: 24, 504>}, {pipeline_mode = #tpu.pipeline_mode<synchronous>, transform_indices = @transform_2, window_bounds = array<i64: 3, 504>}, {transform_indices = @transform_3, window_bounds = array<i64: 8, 504>}]} {
    %c0 = arith.constant 0 : index
    %c0_0 = arith.constant 0 : index
    %0 = vector.load %arg1[%c0, %c0_0] : memref<8x24xf32, #tpu.memory_space<vmem>>, vector<8x24xf32>
    %c0_1 = arith.constant 0 : index
    %c0_2 = arith.constant 0 : index
    %1 = vector.load %arg2[%c0_1, %c0_2] : memref<24x504xf32, #tpu.memory_space<vmem>>, vector<24x504xf32>
    %cst = arith.constant dense<0.000000e+00> : vector<8x504xf32>
    %2 = tpu.matmul %0, %1, %cst {dimension_numbers = #tpu.dot_dimension_numbers<[1], [0], [0], [1], [0, 0, 1, 1], [], []>, precision = #tpu.contract_precision<fp32>} : vector<8x24xf32>, vector<24x504xf32>, vector<8x504xf32> -> vector<8x504xf32>
    %c1 = arith.constant 1 : index
    %c0_3 = arith.constant 0 : index
    %3 = vector.load %arg3[%c1, %c0_3] : memref<3x504xf32, #tpu.memory_space<vmem>>, vector<1x504xf32>
    %4 = vector.shape_cast %3 : vector<1x504xf32> to vector<1x504xf32>
    %5 = vector.broadcast %4 : vector<1x504xf32> to vector<8x504xf32>
    %cst_4 = arith.constant 0.000000e+00 : f32
    %6 = vector.broadcast %cst_4 : f32 to vector<8x504xf32>
    %7 = arith.cmpf one, %5, %6 : vector<8x504xf32>
    %c0_5 = arith.constant 0 : index
    %c0_6 = arith.constant 0 : index
    %8 = vector.load %arg3[%c0_5, %c0_6] : memref<3x504xf32, #tpu.memory_space<vmem>>, vector<1x504xf32>
    %9 = vector.broadcast %8 : vector<1x504xf32> to vector<8x504xf32>
    %10 = arith.addf %2, %9 : vector<8x504xf32>
    %11 = math.sin %10 : vector<8x504xf32>
    %12 = arith.select %7, %2, %11 : vector<8x504xi1>, vector<8x504xf32>
    %c0_7 = arith.constant 0 : index
    %c0_8 = arith.constant 0 : index
    %13 = vector.load %arg4[%c0_7, %c0_8] : memref<8x504xf32, #tpu.memory_space<vmem>>, vector<8x504xf32>
    tpu.vector_store %arg4[%c0_7, %c0_8], %12 {strides = array<i32>} : memref<8x504xf32, #tpu.memory_space<vmem>>, vector<8x504xf32>,
    return
  }
  func.func @transform_0(%arg0: i32) -> (i32, i32) {
    %c0_i32 = arith.constant 0 : i32
    %c0_i32_0 = arith.constant 0 : i32
    return %arg0, %c0_i32 : i32, i32
  }
  func.func @transform_1(%arg0: i32) -> (i32, i32) {
    %c0_i32 = arith.constant 0 : i32
    %c0_i32_0 = arith.constant 0 : i32
    %c0_i32_1 = arith.constant 0 : i32
    return %c0_i32, %c0_i32_0 : i32, i32
  }
  func.func @transform_2(%arg0: i32) -> (i32, i32) {
    %c0_i32 = arith.constant 0 : i32
    %c0_i32_0 = arith.constant 0 : i32
    %c0_i32_1 = arith.constant 0 : i32
    return %c0_i32, %c0_i32_0 : i32, i32
  }
  func.func @transform_3(%arg0: i32) -> (i32, i32) {
    %c0_i32 = arith.constant 0 : i32
    %c0_i32_0 = arith.constant 0 : i32
    return %arg0, %c0_i32 : i32, i32
  }
}

</mosaic_0001>

<llo_original>
// kernel: tpu_custom_call.1
$region0: #{tpu_custom_call.1}
  #allocation0 [shape = 'u32[]', space=smem, size = 0x4, offset = 0x4, fixed_abs, tag = 'smem constant byte address 0x4 - core index']
  #allocation1 [shape = 'u32[144,128]{1,0:T(1,128)}', space=vmem, size = 0x12000, scoped, tag = 'internal scratch']
  %s0 = inlined_call_operand.hbm [shape: f32[16,24], index: 0, kind: input, shape index: {}]
  %s1 = inlined_call_operand.hbm [shape: f32[24,504], index: 1, kind: input, shape index: {}]
  %s2 = inlined_call_operand.hbm [shape: f32[3,504], index: 2, kind: input, shape index: {}]
  %s3 = inlined_call_operand.hbm [shape: f32[16,504], index: 3, kind: output, shape index: {}]
  %s4 = sld [smem:[#allocation0]]
  $region57: #{tpu_custom_call.1} parent=0
    _
  %s6 = ssub.s32 1, %s4
  %s7 = scalar_select 0, %s6, %s4
  $region1: #{tpu_custom_call.1} parent=0
    #allocation2 [shape = 'u8[8192]{0}', space=vmem, size = 0x2000, scoped, tag = 'input window, operand 0']
    #allocation3 [shape = 's32[2]{0}', space=sflag, size = 0x8, scoped, tag = 'scoped memory for tpu_custom_call.1']
    #allocation4 [shape = 's32[2]{0}', space=sflag, size = 0x8, scoped, tag = 'scoped memory for tpu_custom_call.1']
    #allocation5 [shape = 'u8[49152]{0}', space=vmem, size = 0xc000, scoped, tag = 'input window, operand 1, single buffered']
    #allocation6 [shape = 's32[1]{0}', space=sflag, size = 0x4, scoped, tag = 'scoped memory for tpu_custom_call.1']
    #allocation7 [shape = 'u8[8192]{0}', space=vmem, size = 0x2000, scoped, tag = 'input window, operand 2, single buffered']
    #allocation8 [shape = 'u8[32768]{0}', space=vmem, size = 0x8000, scoped, tag = 'output window, operand 0']
    %8 = vsyncpa [#allocation3], 0
    %s9 = scalar_lea.sflag [#allocation3], 1
    %10 = vsyncpa %s9, 0
    %11 = vsyncpa [#allocation6], 0
    %12 = vsyncpa [#allocation4], 0
    %s13 = scalar_lea.sflag [#allocation4], 1
    %14 = vsyncpa %s13, 0
    loop: start=0, step=1, limit=4
    $region2: #{tpu_custom_call.1} parent=1 // loop_pre_header
      _
    $region3: #{tpu_custom_call.1} parent=1 // loop_header
      %s16 = sphi 0, %s20
      %p17 = scmp.ge.s32.totalorder %s16, 4
      %s26 = sphi 0, %s28
      %s29 = sphi 0, %s26
      %s30 = sphi 0, %s29
      %s46 = sphi 0, %s30
      %s50 = sphi 0, %s50
      %s52 = sphi 0, %s50
      %s53 = sphi 0, %s52
      %s67 = sphi 0, %s53
      %s71 = sphi 0, %s71
      %s73 = sphi 0, %s71
      %s74 = sphi 0, %s73
      %s88 = sphi 0, %s74
      %s94 = sphi 0, %s96
      %s97 = sphi 0, %s94
      %s98 = sphi 0, %s97
      %s114 = sphi 0, %s98
    $region4: #{tpu_custom_call.1} parent=1 // loop_header_branch
      %19 = sbr.rel (%p17) target = $region8
    $region5: #{tpu_custom_call.1} parent=1 // loop_body
      %s21 = ssub.s32 %s16, 1
      %s22 = ssub.s32 %s16, 2
      %s23 = sadd.s32 %s16, 1
      %s24 = ssub.s32 %s16, %s23
      %p25 = scmp.eq.s32.totalorder %s24, 0
      %s27 = sadd.s32 %s26, 1
      %s28 = scalar_select %p25, %s26, %s27
      %p31 = pneg %p25
      %p32 = scmp.eq.s32.totalorder %s16, 1
      %p33 = por %p31, %p32
      %p34 = scmp.ne.s32.totalorder %s26, %s29
      %p35 = scmp.eq.s32.totalorder %s16, 0
      %p36 = por %p34, %p35
      %p37 = scmp.ne.s32.totalorder %s26, %s29
      %p38 = scmp.eq.s32.totalorder %s21, 1
      %p39 = por %p37, %p38
      %p40 = scmp.ne.s32.totalorder %s29, %s30
      %p41 = scmp.eq.s32.totalorder %s21, 0
      %p42 = por %p40, %p41
      %p43 = scmp.ne.s32.totalorder %s29, %s30
      %p44 = scmp.eq.s32.totalorder %s22, 1
      %p45 = por %p43, %p44
      %p47 = scmp.ne.s32.totalorder %s30, %s46
      %p48 = scmp.eq.s32.totalorder %s22, 0
      %p49 = por %p47, %p48
      %s51 = sadd.s32 %s50, 1
      %p54 = scmp.eq.s32.totalorder %s16, 1
      %p55 = scmp.ne.s32.totalorder %s50, %s52
      %p56 = scmp.eq.s32.totalorder %s16, 0
      %p57 = por %p55, %p56
      %p58 = scmp.ne.s32.totalorder %s50, %s52
      %p59 = scmp.eq.s32.totalorder %s21, 1
      %p60 = por %p58, %p59
      %p61 = scmp.ne.s32.totalorder %s52, %s53
      %p62 = scmp.eq.s32.totalorder %s21, 0
      %p63 = por %p61, %p62
      %p64 = scmp.ne.s32.totalorder %s52, %s53
      %p65 = scmp.eq.s32.totalorder %s22, 1
      %p66 = por %p64, %p65
      %p68 = scmp.ne.s32.totalorder %s53, %s67
      %p69 = scmp.eq.s32.totalorder %s22, 0
      %p70 = por %p68, %p69
      %s72 = sadd.s32 %s71, 1
      %p75 = scmp.eq.s32.totalorder %s16, 1
      %p76 = scmp.ne.s32.totalorder %s71, %s73
      %p77 = scmp.eq.s32.totalorder %s16, 0
      %p78 = por %p76, %p77
      %p79 = scmp.ne.s32.totalorder %s71, %s73
      %p80 = scmp.eq.s32.totalorder %s21, 1
      %p81 = por %p79, %p80
      %p82 = scmp.ne.s32.totalorder %s73, %s74
      %p83 = scmp.eq.s32.totalorder %s21, 0
      %p84 = por %p82, %p83
      %p85 = scmp.ne.s32.totalorder %s73, %s74
      %p86 = scmp.eq.s32.totalorder %s22, 1
      %p87 = por %p85, %p86
      %p89 = scmp.ne.s32.totalorder %s74, %s88
      %p90 = scmp.eq.s32.totalorder %s22, 0
      %p91 = por %p89, %p90
      %s92 = ssub.s32 %s16, %s23
      %p93 = scmp.eq.s32.totalorder %s92, 0
      %s95 = sadd.s32 %s94, 1
      %s96 = scalar_select %p93, %s94, %s95
      %p99 = pneg %p93
      %p100 = scmp.eq.s32.totalorder %s16, 1
      %p101 = por %p99, %p100
      %p102 = scmp.ne.s32.totalorder %s94, %s97
      %p103 = scmp.eq.s32.totalorder %s16, 0
      %p104 = por %p102, %p103
      %p105 = scmp.ne.s32.totalorder %s94, %s97
      %p106 = scmp.eq.s32.totalorder %s21, 1
      %p107 = por %p105, %p106
      %p108 = scmp.ne.s32.totalorder %s97, %s98
      %p109 = scmp.eq.s32.totalorder %s21, 0
      %p110 = por %p108, %p109
      %p111 = scmp.ne.s32.totalorder %s97, %s98
      %p112 = scmp.eq.s32.totalorder %s22, 1
      %p113 = por %p111, %p112
      %p115 = scmp.ne.s32.totalorder %s98, %s114
      %p116 = scmp.eq.s32.totalorder %s22, 0
      %p117 = por %p115, %p116
      %p118 = scmp.le.s32.totalorder 1, %s16
      %p119 = scmp.lt.s32.totalorder %s16, 3
      %p120 = pnand %p118, %p119
      %p121 = pneg %p120
      // Predicated region
      $region9: #{tpu_custom_call.1} parent=5 // pred_check
        _
      $region10: #{tpu_custom_call.1} parent=5 // pred_check_branch
        %123 = sbr.rel (%p120) target = $region12
      $region11: #{tpu_custom_call.1} parent=5 // pred_region
        %s124 = ssub.s32 %s16, 1
        // Predicated region
        $region13: #{tpu_custom_call.1} parent=11 // pred_check
          %p125 = pneg %p63
        $region14: #{tpu_custom_call.1} parent=11 // pred_check_branch
          %127 = sbr.rel (%p125) target = $region16
        $region15: #{tpu_custom_call.1} parent=11 // pred_region
          %s129 = ssub.s32 1536, 1536
          %130 = vsyncadd [#allocation6], %s129
          %s131 = sshll.u32 [#allocation5], 4
          %s132 = int_to_ptr.vmem [resolvable:$true] %s131
          %137 = dma.hbm_to_vmem [thread:$0]  %s1, 1536, %s132, [#allocation6], 512, 512, 32
        $region16: #{tpu_custom_call.1} parent=11 // pred_fallthru
          _
        // Predicated region
        $region17: #{tpu_custom_call.1} parent=11 // pred_check
          %p138 = pneg %p84
        $region18: #{tpu_custom_call.1} parent=11 // pred_check_branch
          %140 = sbr.rel (%p138) target = $region20
        $region19: #{tpu_custom_call.1} parent=11 // pred_region
          %s142 = ssub.s32 256, 256
          %143 = vsyncadd [#allocation6], %s142
          %s145 = sshll.u32 [#allocation7], 4
          %s146 = int_to_ptr.vmem [resolvable:$true] %s145
          %148 = dma.hbm_to_vmem [thread:$0]  %s2, 256, %s146, [#allocation6]
        $region20: #{tpu_custom_call.1} parent=11 // pred_fallthru
          _
      $region12: #{tpu_custom_call.1} parent=5 // pred_fallthru
        _
      %p149 = scmp.lt.s32.totalorder %s16, 2
      // Predicated region
      $region21: #{tpu_custom_call.1} parent=5 // pred_check
        %p150 = pneg %p149
      $region22: #{tpu_custom_call.1} parent=5 // pred_check_branch
        %152 = sbr.rel (%p150) target = $region24
      $region23: #{tpu_custom_call.1} parent=5 // pred_region
        // Predicated region
        $region25: #{tpu_custom_call.1} parent=23 // pred_check
          %p153 = pneg %p36
        $region26: #{tpu_custom_call.1} parent=23 // pred_check_branch
          %155 = sbr.rel (%p153) target = $region28
        $region27: #{tpu_custom_call.1} parent=23 // pred_region
          %s156 = sand.u32 %s26, 1
          %s157 = scalar_lea.sflag [#allocation3], %s156
          %s158 = sand.u32 %s26, 1
          %s159 = smul.addr %s158, 8
          %s160 = scalar_lea.vmem [#allocation2], %s159
          %s162 = ssub.s32 128, 128
          %163 = vsyncadd %s157, %s162
          %s164 = smul.addr %s16, 128
          %s165 = scalar_lea.hbm %s0, %s164
          %s167 = sshll.u32 %s160, 4
          %s168 = int_to_ptr.vmem [resolvable:$true] %s167
          %170 = dma.hbm_to_vmem [thread:$0]  %s165, 128, %s168, %s157
        $region28: #{tpu_custom_call.1} parent=23 // pred_fallthru
          _
      $region24: #{tpu_custom_call.1} parent=5 // pred_fallthru
        _
      %p171 = scmp.le.s32.totalorder 1, %s16
      %p172 = scmp.lt.s32.totalorder %s16, 3
      %p173 = pnand %p171, %p172
      %p174 = pneg %p173
      // Predicated region
      $region29: #{tpu_custom_call.1} parent=5 // pred_check
        _
      $region30: #{tpu_custom_call.1} parent=5 // pred_check_branch
        %176 = sbr.rel (%p173) target = $region32
      $region31: #{tpu_custom_call.1} parent=5 // pred_region
        %s177 = ssub.s32 %s16, 1
        %s178 = sand.u32 %s29, 1
        %s179 = scalar_lea.sflag [#allocation3], %s178
        %s180 = sand.u32 %s29, 1
        %s181 = smul.addr %s180, 8
        %s182 = scalar_lea.vmem [#allocation2], %s181
        // Predicated region
        $region33: #{tpu_custom_call.1} parent=31 // pred_check
          %p183 = pneg %p42
        $region34: #{tpu_custom_call.1} parent=31 // pred_check_branch
          %185 = sbr.rel (%p183) target = $region36
        $region35: #{tpu_custom_call.1} parent=31 // pred_region
          %186 = dma.done %s179, 128
        $region36: #{tpu_custom_call.1} parent=31 // pred_fallthru
          _
        // Predicated region
        $region37: #{tpu_custom_call.1} parent=31 // pred_check
          %p187 = pneg %p63
        $region38: #{tpu_custom_call.1} parent=31 // pred_check_branch
          %189 = sbr.rel (%p187) target = $region40
        $region39: #{tpu_custom_call.1} parent=31 // pred_region
          %190 = dma.done [#allocation6], 1536
        $region40: #{tpu_custom_call.1} parent=31 // pred_fallthru
          _
        // Predicated region
        $region41: #{tpu_custom_call.1} parent=31 // pred_check
          %p191 = pneg %p84
        $region42: #{tpu_custom_call.1} parent=31 // pred_check_branch
          %193 = sbr.rel (%p191) target = $region44
        $region43: #{tpu_custom_call.1} parent=31 // pred_region
          %194 = dma.done [#allocation6], 256
        $region44: #{tpu_custom_call.1} parent=31 // pred_fallthru
          _
        %s195 = sand.u32 %s29, 1
        %s196 = scalar_lea.sflag [#allocation3], %s195
        %s197 = sand.u32 %s29, 1
        %s198 = smul.addr %s197, 8
        %s199 = scalar_lea.vmem [#allocation2], %s198
        %p200 = pneg %p42
        %p201 = pneg %p39
        %p202 = pneg %p63
        %p203 = pneg %p60
        %p204 = pneg %p84
        %p205 = pneg %p81
        %p206 = pneg %p110
        %p207 = pneg %p107
        %s208 = sand.u32 %s97, 1
        %s209 = scalar_lea.sflag [#allocation4], %s208
        %s210 = sand.u32 %s97, 1
        %s211 = smul.addr %s210, 32
        %s212 = scalar_lea.vmem [#allocation8], %s211
        %v213 = vld [vmem:[%s182] sm:$0xff]
        %v214 = vld [vmem:[#allocation5] sm:$0xff]
        %v215 = vld [vmem:[#allocation5 + $0x8] sm:$0xff]
        %v216 = vld [vmem:[#allocation5 + $0x10] sm:$0xff]
        %v217 = vld [vmem:[#allocation5 + $0x18] sm:$0xff]
        %v218 = vld [vmem:[#allocation5 + $0x20] sm:$0xff]
        %v219 = vld [vmem:[#allocation5 + $0x28] sm:$0xff]
        %v220 = vld [vmem:[#allocation5 + $0x30] sm:$0xff]
        %v221 = vld [vmem:[#allocation5 + $0x38] sm:$0xff]
        %v222 = vld [vmem:[#allocation5 + $0x40] sm:$0xff]
        %v223 = vld [vmem:[#allocation5 + $0x48] sm:$0xff]
        %v224 = vld [vmem:[#allocation5 + $0x50] sm:$0xff]
        %v225 = vld [vmem:[#allocation5 + $0x58] sm:$0xff]
        %vm226 = vcmask 195584
        %v228 = vsel %vm226, %v213, 0
        %v230 = vand.u32 %v215, 4294901760
        %231 = vmatprep.subr.mxu0 %v230
        %v232 = vand.u32 %v214, 4294901760
        %233 = vmatpush1.msra.mxu0 %v232
        %v234 = vand.u32 %v219, 4294901760
        %235 = vmatprep.subr.mxu0 %v234
        %v236 = vand.u32 %v218, 4294901760
        %237 = vmatpush1.msra.mxu0 %v236
        %v238 = vand.u32 %v223, 4294901760
        %239 = vmatprep.subr.mxu0 %v238
        %v240 = vand.u32 %v222, 4294901760
        %241 = vmatpush1.msra.mxu0 %v240
        %242 = vmatprep.subr.mxu0 0.0
        %243 = vmatpush1.msra.mxu0 0.0
        %244 = vmatprep.subr.mxu0 0.0
        %245 = vmatpush1.msra.mxu0 0.0
        %246 = vmatprep.subr.mxu0 0.0
        %247 = vmatpush1.msra.mxu0 0.0
        %248 = vmatprep.subr.mxu0 0.0
        %249 = vmatpush1.msra.mxu0 0.0
        %250 = vmatprep.subr.mxu0 0.0
        %251 = vmatpush1.msra.mxu0 0.0
        %252 = vmatprep.subr.mxu0 0.0
        %253 = vmatpush1.msra.mxu0 0.0
        %254 = vmatprep.subr.mxu0 0.0
        %255 = vmatpush1.msra.mxu0 0.0
        %256 = vmatprep.subr.mxu0 0.0
        %257 = vmatpush1.msra.mxu0 0.0
        %258 = vmatprep.subr.mxu0 0.0
        %259 = vmatpush1.msra.mxu0 0.0
        %260 = vmatprep.subr.mxu0 0.0
        %261 = vmatpush1.msra.mxu0 0.0
        %262 = vmatprep.subr.mxu0 0.0
        %263 = vmatpush1.msra.mxu0 0.0
        %264 = vmatprep.subr.mxu0 0.0
        %265 = vmatpush1.msra.mxu0 0.0
        %266 = vmatprep.subr.mxu0 0.0
        %267 = vmatpush1.msra.mxu0 0.0
        %268 = vmatprep.subr.mxu0 0.0
        %269 = vmatpush1.msra.mxu0 0.0
        %270 = vmatprep.subr.mxu0 0.0
        %271 = vmatpush1.msra.mxu0 0.0
        %272 = vmatprep.subr.mxu0 0.0
        %273 = vmatpush1.msra.mxu0 0.0
        %274 = vmatprep.subr.mxu0 0.0
        %275 = vmatpush1.msra.mxu0 0.0
        %276 = vmatprep.subr.mxu0 0.0
        %277 = vmatpush1.msra.mxu0 0.0
        %278 = vmatprep.subr.mxu0 0.0
        %279 = vmatpush1.msra.mxu0 0.0
        %280 = vmatprep.subr.mxu0 0.0
        %281 = vmatpush1.msra.mxu0 0.0
        %282 = vmatprep.subr.mxu0 0.0
        %283 = vmatpush1.msra.mxu0 0.0
        %284 = vmatprep.subr.mxu0 0.0
        %285 = vmatpush1.msra.mxu0 0.0
        %286 = vmatprep.subr.mxu0 0.0
        %287 = vmatpush1.msra.mxu0 0.0
        %288 = vmatprep.subr.mxu0 0.0
        %289 = vmatpush1.msra.mxu0 0.0
        %290 = vmatprep.subr.mxu0 0.0
        %291 = vmatpush1.msra.mxu0 0.0
        %292 = vmatprep.subr.mxu0 0.0
        %293 = vmatpush1.msra.mxu0 0.0
        %294 = vmatprep.subr.mxu0 0.0
        %295 = vmatpush1.msra.mxu0 0.0
        %296 = vmatprep.subr.mxu0 0.0
        %297 = vmatpush1.msra.mxu0 0.0
        %298 = vmatprep.subr.mxu0 0.0
        %299 = vmatpush1.msra.mxu0 0.0
        %300 = vmatprep.mubr.f32.mxu0 0.0
        %v301 = vand.u32 %v228, 4294901760
        %v302 = vsub.f32 %v228, %v301
        %v303 = vand.u32 %v302, 4294901760
        %v304 = vsub.f32 %v302, %v303
        %v305 = vand.u32 %v304, 4294901760
        %306 = vmatmul.mubr.f32.gmra.mrb[0].mxu0 %v305
        %v307 = vpop.f32.mrb[0].mxu0
        %v308 = vadd.f32 0.0, %v307
        %v309 = vpop.f32.mrb[0].mxu0
        %v310 = vadd.f32 0.0, %v309
        %311 = vdwg.mxu0
        %v312 = vand.u32 %v215, 4294901760
        %v313 = vsub.f32 %v215, %v312
        %v314 = vand.u32 %v313, 4294901760
        %v315 = vsub.f32 %v313, %v314
        %v316 = vand.u32 %v315, 4294901760
        %317 = vmatprep.subr.mxu0 %v316
        %v318 = vand.u32 %v214, 4294901760
        %v319 = vsub.f32 %v214, %v318
        %v320 = vand.u32 %v319, 4294901760
        %v321 = vsub.f32 %v319, %v320
        %v322 = vand.u32 %v321, 4294901760
        %323 = vmatpush1.msra.mxu0 %v322
        %v324 = vand.u32 %v219, 4294901760
        %v325 = vsub.f32 %v219, %v324
        %v326 = vand.u32 %v325, 4294901760
        %v327 = vsub.f32 %v325, %v326
        %v328 = vand.u32 %v327, 4294901760
        %329 = vmatprep.subr.mxu0 %v328
        %v330 = vand.u32 %v218, 4294901760
        %v331 = vsub.f32 %v218, %v330
        %v332 = vand.u32 %v331, 4294901760
        %v333 = vsub.f32 %v331, %v332
        %v334 = vand.u32 %v333, 4294901760
        %335 = vmatpush1.msra.mxu0 %v334
        %v336 = vand.u32 %v223, 4294901760
        %v337 = vsub.f32 %v223, %v336
        %v338 = vand.u32 %v337, 4294901760
        %v339 = vsub.f32 %v337, %v338
        %v340 = vand.u32 %v339, 4294901760
        %341 = vmatprep.subr.mxu0 %v340
        %v342 = vand.u32 %v222, 4294901760
        %v343 = vsub.f32 %v222, %v342
        %v344 = vand.u32 %v343, 4294901760
        %v345 = vsub.f32 %v343, %v344
        %v346 = vand.u32 %v345, 4294901760
        %347 = vmatpush1.msra.mxu0 %v346
        %348 = vmatprep.subr.mxu0 0.0
        %349 = vmatpush1.msra.mxu0 0.0
        %350 = vmatprep.subr.mxu0 0.0
        %351 = vmatpush1.msra.mxu0 0.0
        %352 = vmatprep.subr.mxu0 0.0
        %353 = vmatpush1.msra.mxu0 0.0
        %354 = vmatprep.subr.mxu0 0.0
        %355 = vmatpush1.msra.mxu0 0.0
        %356 = vmatprep.subr.mxu0 0.0
        %357 = vmatpush1.msra.mxu0 0.0
        %358 = vmatprep.subr.mxu0 0.0
        %359 = vmatpush1.msra.mxu0 0.0
        %360 = vmatprep.subr.mxu0 0.0
        %361 = vmatpush1.msra.mxu0 0.0
        %362 = vmatprep.subr.mxu0 0.0
        %363 = vmatpush1.msra.mxu0 0.0
        %364 = vmatprep.subr.mxu0 0.0
        %365 = vmatpush1.msra.mxu0 0.0
        %366 = vmatprep.subr.mxu0 0.0
        %367 = vmatpush1.msra.mxu0 0.0
        %368 = vmatprep.subr.mxu0 0.0
        %369 = vmatpush1.msra.mxu0 0.0
        %370 = vmatprep.subr.mxu0 0.0
        %371 = vmatpush1.msra.mxu0 0.0
        %372 = vmatprep.subr.mxu0 0.0
        %373 = vmatpush1.msra.mxu0 0.0
        %374 = vmatprep.subr.mxu0 0.0
        %375 = vmatpush1.msra.mxu0 0.0
        %376 = vmatprep.subr.mxu0 0.0
        %377 = vmatpush1.msra.mxu0 0.0
        %378 = vmatprep.subr.mxu0 0.0
        %379 = vmatpush1.msra.mxu0 0.0
        %380 = vmatprep.subr.mxu0 0.0
        %381 = vmatpush1.msra.mxu0 0.0
        %382 = vmatprep.subr.mxu0 0.0
        %383 = vmatpush1.msra.mxu0 0.0
        %384 = vmatprep.subr.mxu0 0.0
        %385 = vmatpush1.msra.mxu0 0.0
        %386 = vmatprep.subr.mxu0 0.0
        %387 = vmatpush1.msra.mxu0 0.0
        %388 = vmatprep.subr.mxu0 0.0
        %389 = vmatpush1.msra.mxu0 0.0
        %390 = vmatprep.subr.mxu0 0.0
        %391 = vmatpush1.msra.mxu0 0.0
        %392 = vmatprep.subr.mxu0 0.0
        %393 = vmatpush1.msra.mxu0 0.0
        %394 = vmatprep.subr.mxu0 0.0
        %395 = vmatpush1.msra.mxu0 0.0
        %396 = vmatprep.subr.mxu0 0.0
        %397 = vmatpush1.msra.mxu0 0.0
        %398 = vmatprep.subr.mxu0 0.0
        %399 = vmatpush1.msra.mxu0 0.0
        %400 = vmatprep.subr.mxu0 0.0
        %401 = vmatpush1.msra.mxu0 0.0
        %402 = vmatprep.subr.mxu0 0.0
        %403 = vmatpush1.msra.mxu0 0.0
        %404 = vmatprep.subr.mxu0 0.0
        %405 = vmatpush1.msra.mxu0 0.0
        %406 = vmatprep.mubr.f32.mxu0 0.0
        %v407 = vand.u32 %v228, 4294901760
        %408 = vmatmul.mubr.f32.gmra.mrb[0].mxu0 %v407
        %v409 = vpop.f32.mrb[0].mxu0
        %v410 = vadd.f32 %v308, %v409
        %v411 = vpop.f32.mrb[0].mxu0
        %v412 = vadd.f32 %v310, %v411
        %413 = vdwg.mxu0
        %v414 = vand.u32 %v215, 4294901760
        %v415 = vsub.f32 %v215, %v414
        %416 = vmatprep.subr.mxu0 %v415
        %v417 = vand.u32 %v214, 4294901760
        %v418 = vsub.f32 %v214, %v417
        %419 = vmatpush1.msra.mxu0 %v418
        %v420 = vand.u32 %v219, 4294901760
        %v421 = vsub.f32 %v219, %v420
        %422 = vmatprep.subr.mxu0 %v421
        %v423 = vand.u32 %v218, 4294901760
        %v424 = vsub.f32 %v218, %v423
        %425 = vmatpush1.msra.mxu0 %v424
        %v426 = vand.u32 %v223, 4294901760
        %v427 = vsub.f32 %v223, %v426
        %428 = vmatprep.subr.mxu0 %v427
        %v429 = vand.u32 %v222, 4294901760
        %v430 = vsub.f32 %v222, %v429
        %431 = vmatpush1.msra.mxu0 %v430
        %432 = vmatprep.subr.mxu0 0.0
        %433 = vmatpush1.msra.mxu0 0.0
        %434 = vmatprep.subr.mxu0 0.0
        %435 = vmatpush1.msra.mxu0 0.0
        %436 = vmatprep.subr.mxu0 0.0
        %437 = vmatpush1.msra.mxu0 0.0
        %438 = vmatprep.subr.mxu0 0.0
        %439 = vmatpush1.msra.mxu0 0.0
        %440 = vmatprep.subr.mxu0 0.0
        %441 = vmatpush1.msra.mxu0 0.0
        %442 = vmatprep.subr.mxu0 0.0
        %443 = vmatpush1.msra.mxu0 0.0
        %444 = vmatprep.subr.mxu0 0.0
        %445 = vmatpush1.msra.mxu0 0.0
        %446 = vmatprep.subr.mxu0 0.0
        %447 = vmatpush1.msra.mxu0 0.0
        %448 = vmatprep.subr.mxu0 0.0
        %449 = vmatpush1.msra.mxu0 0.0
        %450 = vmatprep.subr.mxu0 0.0
        %451 = vmatpush1.msra.mxu0 0.0
        %452 = vmatprep.subr.mxu0 0.0
        %453 = vmatpush1.msra.mxu0 0.0
        %454 = vmatprep.subr.mxu0 0.0
        %455 = vmatpush1.msra.mxu0 0.0
        %456 = vmatprep.subr.mxu0 0.0
        %457 = vmatpush1.msra.mxu0 0.0
        %458 = vmatprep.subr.mxu0 0.0
        %459 = vmatpush1.msra.mxu0 0.0
        %460 = vmatprep.subr.mxu0 0.0
        %461 = vmatpush1.msra.mxu0 0.0
        %462 = vmatprep.subr.mxu0 0.0
        %463 = vmatpush1.msra.mxu0 0.0
        %464 = vmatprep.subr.mxu0 0.0
        %465 = vmatpush1.msra.mxu0 0.0
        %466 = vmatprep.subr.mxu0 0.0
        %467 = vmatpush1.msra.mxu0 0.0
        %468 = vmatprep.subr.mxu0 0.0
        %469 = vmatpush1.msra.mxu0 0.0
        %470 = vmatprep.subr.mxu0 0.0
        %471 = vmatpush1.msra.mxu0 0.0
        %472 = vmatprep.subr.mxu0 0.0
        %473 = vmatpush1.msra.mxu0 0.0
        %474 = vmatprep.subr.mxu0 0.0
        %475 = vmatpush1.msra.mxu0 0.0
        %476 = vmatprep.subr.mxu0 0.0
        %477 = vmatpush1.msra.mxu0 0.0
        %478 = vmatprep.subr.mxu0 0.0
        %479 = vmatpush1.msra.mxu0 0.0
        %480 = vmatprep.subr.mxu0 0.0
        %481 = vmatpush1.msra.mxu0 0.0
        %482 = vmatprep.subr.mxu0 0.0
        %483 = vmatpush1.msra.mxu0 0.0
        %484 = vmatprep.subr.mxu0 0.0
        %485 = vmatpush1.msra.mxu0 0.0
        %486 = vmatprep.subr.mxu0 0.0
        %487 = vmatpush1.msra.mxu0 0.0
        %488 = vmatprep.subr.mxu0 0.0
        %489 = vmatpush1.msra.mxu0 0.0
        %490 = vmatprep.mubr.f32.mxu0 0.0
        %v491 = vand.u32 %v228, 4294901760
        %v492 = vsub.f32 %v228, %v491
        %493 = vmatmul.mubr.f32.gmra.mrb[0].mxu0 %v492
        %v494 = vpop.f32.mrb[0].mxu0
        %v495 = vadd.f32 %v410, %v494
        %v496 = vpop.f32.mrb[0].mxu0
        %v497 = vadd.f32 %v412, %v496
        %498 = vdwg.mxu0
        %v499 = vand.u32 %v215, 4294901760
        %500 = vmatprep.subr.mxu0 %v499
        %v501 = vand.u32 %v214, 4294901760
        %502 = vmatpush1.msra.mxu0 %v501
        %v503 = vand.u32 %v219, 4294901760
        %504 = vmatprep.subr.mxu0 %v503
        %v505 = vand.u32 %v218, 4294901760
        %506 = vmatpush1.msra.mxu0 %v505
        %v507 = vand.u32 %v223, 4294901760
        %508 = vmatprep.subr.mxu0 %v507
        %v509 = vand.u32 %v222, 4294901760
        %510 = vmatpush1.msra.mxu0 %v509
        %511 = vmatprep.subr.mxu0 0.0
        %512 = vmatpush1.msra.mxu0 0.0
        %513 = vmatprep.subr.mxu0 0.0
        %514 = vmatpush1.msra.mxu0 0.0
        %515 = vmatprep.subr.mxu0 0.0
        %516 = vmatpush1.msra.mxu0 0.0
        %517 = vmatprep.subr.mxu0 0.0
        %518 = vmatpush1.msra.mxu0 0.0
        %519 = vmatprep.subr.mxu0 0.0
        %520 = vmatpush1.msra.mxu0 0.0
        %521 = vmatprep.subr.mxu0 0.0
        %522 = vmatpush1.msra.mxu0 0.0
        %523 = vmatprep.subr.mxu0 0.0
        %524 = vmatpush1.msra.mxu0 0.0
        %525 = vmatprep.subr.mxu0 0.0
        %526 = vmatpush1.msra.mxu0 0.0
        %527 = vmatprep.subr.mxu0 0.0
        %528 = vmatpush1.msra.mxu0 0.0
        %529 = vmatprep.subr.mxu0 0.0
        %530 = vmatpush1.msra.mxu0 0.0
        %531 = vmatprep.subr.mxu0 0.0
        %532 = vmatpush1.msra.mxu0 0.0
        %533 = vmatprep.subr.mxu0 0.0
        %534 = vmatpush1.msra.mxu0 0.0
        %535 = vmatprep.subr.mxu0 0.0
        %536 = vmatpush1.msra.mxu0 0.0
        %537 = vmatprep.subr.mxu0 0.0
        %538 = vmatpush1.msra.mxu0 0.0
        %539 = vmatprep.subr.mxu0 0.0
        %540 = vmatpush1.msra.mxu0 0.0
        %541 = vmatprep.subr.mxu0 0.0
        %542 = vmatpush1.msra.mxu0 0.0
        %543 = vmatprep.subr.mxu0 0.0
        %544 = vmatpush1.msra.mxu0 0.0
        %545 = vmatprep.subr.mxu0 0.0
        %546 = vmatpush1.msra.mxu0 0.0
        %547 = vmatprep.subr.mxu0 0.0
        %548 = vmatpush1.msra.mxu0 0.0
        %549 = vmatprep.subr.mxu0 0.0
        %550 = vmatpush1.msra.mxu0 0.0
        %551 = vmatprep.subr.mxu0 0.0
        %552 = vmatpush1.msra.mxu0 0.0
        %553 = vmatprep.subr.mxu0 0.0
        %554 = vmatpush1.msra.mxu0 0.0
        %555 = vmatprep.subr.mxu0 0.0
        %556 = vmatpush1.msra.mxu0 0.0
        %557 = vmatprep.subr.mxu0 0.0
        %558 = vmatpush1.msra.mxu0 0.0
        %559 = vmatprep.subr.mxu0 0.0
        %560 = vmatpush1.msra.mxu0 0.0
        %561 = vmatprep.subr.mxu0 0.0
        %562 = vmatpush1.msra.mxu0 0.0
        %563 = vmatprep.subr.mxu0 0.0
        %564 = vmatpush1.msra.mxu0 0.0
        %565 = vmatprep.subr.mxu0 0.0
        %566 = vmatpush1.msra.mxu0 0.0
        %567 = vmatprep.subr.mxu0 0.0
        %568 = vmatpush1.msra.mxu0 0.0
        %569 = vmatprep.mubr.f32.mxu0 0.0
        %v570 = vand.u32 %v228, 4294901760
        %v571 = vsub.f32 %v228, %v570
        %v572 = vand.u32 %v571, 4294901760
        %573 = vmatmul.mubr.f32.gmra.mrb[0].mxu0 %v572
        %v574 = vpop.f32.mrb[0].mxu0
        %v575 = vadd.f32 %v495, %v574
        %v576 = vpop.f32.mrb[0].mxu0
        %v577 = vadd.f32 %v497, %v576
        %578 = vdwg.mxu0
        %v579 = vand.u32 %v215, 4294901760
        %v580 = vsub.f32 %v215, %v579
        %v581 = vand.u32 %v580, 4294901760
        %582 = vmatprep.subr.mxu0 %v581
        %v583 = vand.u32 %v214, 4294901760
        %v584 = vsub.f32 %v214, %v583
        %v585 = vand.u32 %v584, 4294901760
        %586 = vmatpush1.msra.mxu0 %v585
        %v587 = vand.u32 %v219, 4294901760
        %v588 = vsub.f32 %v219, %v587
        %v589 = vand.u32 %v588, 4294901760
        %590 = vmatprep.subr.mxu0 %v589
        %v591 = vand.u32 %v218, 4294901760
        %v592 = vsub.f32 %v218, %v591
        %v593 = vand.u32 %v592, 4294901760
        %594 = vmatpush1.msra.mxu0 %v593
        %v595 = vand.u32 %v223, 4294901760
        %v596 = vsub.f32 %v223, %v595
        %v597 = vand.u32 %v596, 4294901760
        %598 = vmatprep.subr.mxu0 %v597
        %v599 = vand.u32 %v222, 4294901760
        %v600 = vsub.f32 %v222, %v599
        %v601 = vand.u32 %v600, 4294901760
        %602 = vmatpush1.msra.mxu0 %v601
        %603 = vmatprep.subr.mxu0 0.0
        %604 = vmatpush1.msra.mxu0 0.0
        %605 = vmatprep.subr.mxu0 0.0
        %606 = vmatpush1.msra.mxu0 0.0
        %607 = vmatprep.subr.mxu0 0.0
        %608 = vmatpush1.msra.mxu0 0.0
        %609 = vmatprep.subr.mxu0 0.0
        %610 = vmatpush1.msra.mxu0 0.0
        %611 = vmatprep.subr.mxu0 0.0
        %612 = vmatpush1.msra.mxu0 0.0
        %613 = vmatprep.subr.mxu0 0.0
        %614 = vmatpush1.msra.mxu0 0.0
        %615 = vmatprep.subr.mxu0 0.0
        %616 = vmatpush1.msra.mxu0 0.0
        %617 = vmatprep.subr.mxu0 0.0
        %618 = vmatpush1.msra.mxu0 0.0
        %619 = vmatprep.subr.mxu0 0.0
        %620 = vmatpush1.msra.mxu0 0.0
        %621 = vmatprep.subr.mxu0 0.0
        %622 = vmatpush1.msra.mxu0 0.0
        %623 = vmatprep.subr.mxu0 0.0
        %624 = vmatpush1.msra.mxu0 0.0
        %625 = vmatprep.subr.mxu0 0.0
        %626 = vmatpush1.msra.mxu0 0.0
        %627 = vmatprep.subr.mxu0 0.0
        %628 = vmatpush1.msra.mxu0 0.0
        %629 = vmatprep.subr.mxu0 0.0
        %630 = vmatpush1.msra.mxu0 0.0
        %631 = vmatprep.subr.mxu0 0.0
        %632 = vmatpush1.msra.mxu0 0.0
        %633 = vmatprep.subr.mxu0 0.0
        %634 = vmatpush1.msra.mxu0 0.0
        %635 = vmatprep.subr.mxu0 0.0
        %636 = vmatpush1.msra.mxu0 0.0
        %637 = vmatprep.subr.mxu0 0.0
        %638 = vmatpush1.msra.mxu0 0.0
        %639 = vmatprep.subr.mxu0 0.0
        %640 = vmatpush1.msra.mxu0 0.0
        %641 = vmatprep.subr.mxu0 0.0
        %642 = vmatpush1.msra.mxu0 0.0
        %643 = vmatprep.subr.mxu0 0.0
        %644 = vmatpush1.msra.mxu0 0.0
        %645 = vmatprep.subr.mxu0 0.0
        %646 = vmatpush1.msra.mxu0 0.0
        %647 = vmatprep.subr.mxu0 0.0
        %648 = vmatpush1.msra.mxu0 0.0
        %649 = vmatprep.subr.mxu0 0.0
        %650 = vmatpush1.msra.mxu0 0.0
        %651 = vmatprep.subr.mxu0 0.0
        %652 = vmatpush1.msra.mxu0 0.0
        %653 = vmatprep.subr.mxu0 0.0
        %654 = vmatpush1.msra.mxu0 0.0
        %655 = vmatprep.subr.mxu0 0.0
        %656 = vmatpush1.msra.mxu0 0.0
        %657 = vmatprep.subr.mxu0 0.0
        %658 = vmatpush1.msra.mxu0 0.0
        %659 = vmatprep.subr.mxu0 0.0
        %660 = vmatpush1.msra.mxu0 0.0
        %661 = vmatprep.mubr.f32.mxu0 0.0
        %v662 = vand.u32 %v228, 4294901760
        %663 = vmatmul.mubr.f32.gmra.mrb[0].mxu0 %v662
        %v664 = vpop.f32.mrb[0].mxu0
        %v665 = vadd.f32 %v575, %v664
        %v666 = vpop.f32.mrb[0].mxu0
        %v667 = vadd.f32 %v577, %v666
        %668 = vdwg.mxu0
        %v669 = vand.u32 %v215, 4294901760
        %670 = vmatprep.subr.mxu0 %v669
        %v671 = vand.u32 %v214, 4294901760
        %672 = vmatpush1.msra.mxu0 %v671
        %v673 = vand.u32 %v219, 4294901760
        %674 = vmatprep.subr.mxu0 %v673
        %v675 = vand.u32 %v218, 4294901760
        %676 = vmatpush1.msra.mxu0 %v675
        %v677 = vand.u32 %v223, 4294901760
        %678 = vmatprep.subr.mxu0 %v677
        %v679 = vand.u32 %v222, 4294901760
        %680 = vmatpush1.msra.mxu0 %v679
        %681 = vmatprep.subr.mxu0 0.0
        %682 = vmatpush1.msra.mxu0 0.0
        %683 = vmatprep.subr.mxu0 0.0
        %684 = vmatpush1.msra.mxu0 0.0
        %685 = vmatprep.subr.mxu0 0.0
        %686 = vmatpush1.msra.mxu0 0.0
        %687 = vmatprep.subr.mxu0 0.0
        %688 = vmatpush1.msra.mxu0 0.0
        %689 = vmatprep.subr.mxu0 0.0
        %690 = vmatpush1.msra.mxu0 0.0
        %691 = vmatprep.subr.mxu0 0.0
        %692 = vmatpush1.msra.mxu0 0.0
        %693 = vmatprep.subr.mxu0 0.0
        %694 = vmatpush1.msra.mxu0 0.0
        %695 = vmatprep.subr.mxu0 0.0
        %696 = vmatpush1.msra.mxu0 0.0
        %697 = vmatprep.subr.mxu0 0.0
        %698 = vmatpush1.msra.mxu0 0.0
        %699 = vmatprep.subr.mxu0 0.0
        %700 = vmatpush1.msra.mxu0 0.0
        %701 = vmatprep.subr.mxu0 0.0
        %702 = vmatpush1.msra.mxu0 0.0
        %703 = vmatprep.subr.mxu0 0.0
        %704 = vmatpush1.msra.mxu0 0.0
        %705 = vmatprep.subr.mxu0 0.0
        %706 = vmatpush1.msra.mxu0 0.0
        %707 = vmatprep.subr.mxu0 0.0
        %708 = vmatpush1.msra.mxu0 0.0
        %709 = vmatprep.subr.mxu0 0.0
        %710 = vmatpush1.msra.mxu0 0.0
        %711 = vmatprep.subr.mxu0 0.0
        %712 = vmatpush1.msra.mxu0 0.0
        %713 = vmatprep.subr.mxu0 0.0
        %714 = vmatpush1.msra.mxu0 0.0
        %715 = vmatprep.subr.mxu0 0.0
        %716 = vmatpush1.msra.mxu0 0.0
        %717 = vmatprep.subr.mxu0 0.0
        %718 = vmatpush1.msra.mxu0 0.0
        %719 = vmatprep.subr.mxu0 0.0
        %720 = vmatpush1.msra.mxu0 0.0
        %721 = vmatprep.subr.mxu0 0.0
        %722 = vmatpush1.msra.mxu0 0.0
        %723 = vmatprep.subr.mxu0 0.0
        %724 = vmatpush1.msra.mxu0 0.0
        %725 = vmatprep.subr.mxu0 0.0
        %726 = vmatpush1.msra.mxu0 0.0
        %727 = vmatprep.subr.mxu0 0.0
        %728 = vmatpush1.msra.mxu0 0.0
        %729 = vmatprep.subr.mxu0 0.0
        %730 = vmatpush1.msra.mxu0 0.0
        %731 = vmatprep.subr.mxu0 0.0
        %732 = vmatpush1.msra.mxu0 0.0
        %733 = vmatprep.subr.mxu0 0.0
        %734 = vmatpush1.msra.mxu0 0.0
        %735 = vmatprep.subr.mxu0 0.0
        %736 = vmatpush1.msra.mxu0 0.0
        %737 = vmatprep.subr.mxu0 0.0
        %738 = vmatpush1.msra.mxu0 0.0
        %739 = vmatprep.mubr.f32.mxu0 0.0
        %v740 = vand.u32 %v228, 4294901760
        %741 = vmatmul.mubr.f32.gmra.mrb[0].mxu0 %v740
        %v742 = vpop.f32.mrb[0].mxu0
        %v743 = vadd.f32 %v665, %v742
        %v744 = vpop.f32.mrb[0].mxu0
        %v745 = vadd.f32 %v667, %v744
        %746 = vdwg.mxu0
        %v747 = vand.u32 %v217, 4294901760
        %748 = vmatprep.subr.mxu0 %v747
        %v749 = vand.u32 %v216, 4294901760
        %750 = vmatpush1.msra.mxu0 %v749
        %v751 = vand.u32 %v221, 4294901760
        %752 = vmatprep.subr.mxu0 %v751
        %v753 = vand.u32 %v220, 4294901760
        %754 = vmatpush1.msra.mxu0 %v753
        %v755 = vand.u32 %v225, 4294901760
        %756 = vmatprep.subr.mxu0 %v755
        %v757 = vand.u32 %v224, 4294901760
        %758 = vmatpush1.msra.mxu0 %v757
        %759 = vmatprep.subr.mxu0 0.0
        %760 = vmatpush1.msra.mxu0 0.0
        %761 = vmatprep.subr.mxu0 0.0
        %762 = vmatpush1.msra.mxu0 0.0
        %763 = vmatprep.subr.mxu0 0.0
        %764 = vmatpush1.msra.mxu0 0.0
        %765 = vmatprep.subr.mxu0 0.0
        %766 = vmatpush1.msra.mxu0 0.0
        %767 = vmatprep.subr.mxu0 0.0
        %768 = vmatpush1.msra.mxu0 0.0
        %769 = vmatprep.subr.mxu0 0.0
        %770 = vmatpush1.msra.mxu0 0.0
        %771 = vmatprep.subr.mxu0 0.0
        %772 = vmatpush1.msra.mxu0 0.0
        %773 = vmatprep.subr.mxu0 0.0
        %774 = vmatpush1.msra.mxu0 0.0
        %775 = vmatprep.subr.mxu0 0.0
        %776 = vmatpush1.msra.mxu0 0.0
        %777 = vmatprep.subr.mxu0 0.0
        %778 = vmatpush1.msra.mxu0 0.0
        %779 = vmatprep.subr.mxu0 0.0
        %780 = vmatpush1.msra.mxu0 0.0
        %781 = vmatprep.subr.mxu0 0.0
        %782 = vmatpush1.msra.mxu0 0.0
        %783 = vmatprep.subr.mxu0 0.0
        %784 = vmatpush1.msra.mxu0 0.0
        %785 = vmatprep.subr.mxu0 0.0
        %786 = vmatpush1.msra.mxu0 0.0
        %787 = vmatprep.subr.mxu0 0.0
        %788 = vmatpush1.msra.mxu0 0.0
        %789 = vmatprep.subr.mxu0 0.0
        %790 = vmatpush1.msra.mxu0 0.0
        %791 = vmatprep.subr.mxu0 0.0
        %792 = vmatpush1.msra.mxu0 0.0
        %793 = vmatprep.subr.mxu0 0.0
        %794 = vmatpush1.msra.mxu0 0.0
        %795 = vmatprep.subr.mxu0 0.0
        %796 = vmatpush1.msra.mxu0 0.0
        %797 = vmatprep.subr.mxu0 0.0
        %798 = vmatpush1.msra.mxu0 0.0
        %799 = vmatprep.subr.mxu0 0.0
        %800 = vmatpush1.msra.mxu0 0.0
        %801 = vmatprep.subr.mxu0 0.0
        %802 = vmatpush1.msra.mxu0 0.0
        %803 = vmatprep.subr.mxu0 0.0
        %804 = vmatpush1.msra.mxu0 0.0
        %805 = vmatprep.subr.mxu0 0.0
        %806 = vmatpush1.msra.mxu0 0.0
        %807 = vmatprep.subr.mxu0 0.0
        %808 = vmatpush1.msra.mxu0 0.0
        %809 = vmatprep.subr.mxu0 0.0
        %810 = vmatpush1.msra.mxu0 0.0
        %811 = vmatprep.subr.mxu0 0.0
        %812 = vmatpush1.msra.mxu0 0.0
        %813 = vmatprep.subr.mxu0 0.0
        %814 = vmatpush1.msra.mxu0 0.0
        %815 = vmatprep.subr.mxu0 0.0
        %816 = vmatpush1.msra.mxu0 0.0
        %817 = vmatprep.mubr.f32.mxu0 0.0
        %v818 = vand.u32 %v228, 4294901760
        %v819 = vsub.f32 %v228, %v818
        %v820 = vand.u32 %v819, 4294901760
        %v821 = vsub.f32 %v819, %v820
        %v822 = vand.u32 %v821, 4294901760
        %823 = vmatmul.mubr.f32.gmra.mrb[0].mxu0 %v822
        %v824 = vpop.f32.mrb[0].mxu0
        %v825 = vadd.f32 0.0, %v824
        %v826 = vpop.f32.mrb[0].mxu0
        %v827 = vadd.f32 0.0, %v826
        %828 = vdwg.mxu0
        %v829 = vand.u32 %v217, 4294901760
        %v830 = vsub.f32 %v217, %v829
        %v831 = vand.u32 %v830, 4294901760
        %v832 = vsub.f32 %v830, %v831
        %v833 = vand.u32 %v832, 4294901760
        %834 = vmatprep.subr.mxu0 %v833
        %v835 = vand.u32 %v216, 4294901760
        %v836 = vsub.f32 %v216, %v835
        %v837 = vand.u32 %v836, 4294901760
        %v838 = vsub.f32 %v836, %v837
        %v839 = vand.u32 %v838, 4294901760
        %840 = vmatpush1.msra.mxu0 %v839
        %v841 = vand.u32 %v221, 4294901760
        %v842 = vsub.f32 %v221, %v841
        %v843 = vand.u32 %v842, 4294901760
        %v844 = vsub.f32 %v842, %v843
        %v845 = vand.u32 %v844, 4294901760
        %846 = vmatprep.subr.mxu0 %v845
        %v847 = vand.u32 %v220, 4294901760
        %v848 = vsub.f32 %v220, %v847
        %v849 = vand.u32 %v848, 4294901760
        %v850 = vsub.f32 %v848, %v849
        %v851 = vand.u32 %v850, 4294901760
        %852 = vmatpush1.msra.mxu0 %v851
        %v853 = vand.u32 %v225, 4294901760
        %v854 = vsub.f32 %v225, %v853
        %v855 = vand.u32 %v854, 4294901760
        %v856 = vsub.f32 %v854, %v855
        %v857 = vand.u32 %v856, 4294901760
        %858 = vmatprep.subr.mxu0 %v857
        %v859 = vand.u32 %v224, 4294901760
        %v860 = vsub.f32 %v224, %v859
        %v861 = vand.u32 %v860, 4294901760
        %v862 = vsub.f32 %v860, %v861
        %v863 = vand.u32 %v862, 4294901760
        %864 = vmatpush1.msra.mxu0 %v863
        %865 = vmatprep.subr.mxu0 0.0
        %866 = vmatpush1.msra.mxu0 0.0
        %867 = vmatprep.subr.mxu0 0.0
        %868 = vmatpush1.msra.mxu0 0.0
        %869 = vmatprep.subr.mxu0 0.0
        %870 = vmatpush1.msra.mxu0 0.0
        %871 = vmatprep.subr.mxu0 0.0
        %872 = vmatpush1.msra.mxu0 0.0
        %873 = vmatprep.subr.mxu0 0.0
        %874 = vmatpush1.msra.mxu0 0.0
        %875 = vmatprep.subr.mxu0 0.0
        %876 = vmatpush1.msra.mxu0 0.0
        %877 = vmatprep.subr.mxu0 0.0
        %878 = vmatpush1.msra.mxu0 0.0
        %879 = vmatprep.subr.mxu0 0.0
        %880 = vmatpush1.msra.mxu0 0.0
        %881 = vmatprep.subr.mxu0 0.0
        %882 = vmatpush1.msra.mxu0 0.0
        %883 = vmatprep.subr.mxu0 0.0
        %884 = vmatpush1.msra.mxu0 0.0
        %885 = vmatprep.subr.mxu0 0.0
        %886 = vmatpush1.msra.mxu0 0.0
        %887 = vmatprep.subr.mxu0 0.0
        %888 = vmatpush1.msra.mxu0 0.0
        %889 = vmatprep.subr.mxu0 0.0
        %890 = vmatpush1.msra.mxu0 0.0
        %891 = vmatprep.subr.mxu0 0.0
        %892 = vmatpush1.msra.mxu0 0.0
        %893 = vmatprep.subr.mxu0 0.0
        %894 = vmatpush1.msra.mxu0 0.0
        %895 = vmatprep.subr.mxu0 0.0
        %896 = vmatpush1.msra.mxu0 0.0
        %897 = vmatprep.subr.mxu0 0.0
        %898 = vmatpush1.msra.mxu0 0.0
        %899 = vmatprep.subr.mxu0 0.0
        %900 = vmatpush1.msra.mxu0 0.0
        %901 = vmatprep.subr.mxu0 0.0
        %902 = vmatpush1.msra.mxu0 0.0
        %903 = vmatprep.subr.mxu0 0.0
        %904 = vmatpush1.msra.mxu0 0.0
        %905 = vmatprep.subr.mxu0 0.0
        %906 = vmatpush1.msra.mxu0 0.0
        %907 = vmatprep.subr.mxu0 0.0
        %908 = vmatpush1.msra.mxu0 0.0
        %909 = vmatprep.subr.mxu0 0.0
        %910 = vmatpush1.msra.mxu0 0.0
        %911 = vmatprep.subr.mxu0 0.0
        %912 = vmatpush1.msra.mxu0 0.0
        %913 = vmatprep.subr.mxu0 0.0
        %914 = vmatpush1.msra.mxu0 0.0
        %915 = vmatprep.subr.mxu0 0.0
        %916 = vmatpush1.msra.mxu0 0.0
        %917 = vmatprep.subr.mxu0 0.0
        %918 = vmatpush1.msra.mxu0 0.0
        %919 = vmatprep.subr.mxu0 0.0
        %920 = vmatpush1.msra.mxu0 0.0
        %921 = vmatprep.subr.mxu0 0.0
        %922 = vmatpush1.msra.mxu0 0.0
        %923 = vmatprep.mubr.f32.mxu0 0.0
        %v924 = vand.u32 %v228, 4294901760
        %925 = vmatmul.mubr.f32.gmra.mrb[0].mxu0 %v924
        %v926 = vpop.f32.mrb[0].mxu0
        %v927 = vadd.f32 %v825, %v926
        %v928 = vpop.f32.mrb[0].mxu0
        %v929 = vadd.f32 %v827, %v928
        %930 = vdwg.mxu0
        %v931 = vand.u32 %v217, 4294901760
        %v932 = vsub.f32 %v217, %v931
        %933 = vmatprep.subr.mxu0 %v932
        %v934 = vand.u32 %v216, 4294901760
        %v935 = vsub.f32 %v216, %v934
        %936 = vmatpush1.msra.mxu0 %v935
        %v937 = vand.u32 %v221, 4294901760
        %v938 = vsub.f32 %v221, %v937
        %939 = vmatprep.subr.mxu0 %v938
        %v940 = vand.u32 %v220, 4294901760
        %v941 = vsub.f32 %v220, %v940
        %942 = vmatpush1.msra.mxu0 %v941
        %v943 = vand.u32 %v225, 4294901760
        %v944 = vsub.f32 %v225, %v943
        %945 = vmatprep.subr.mxu0 %v944
        %v946 = vand.u32 %v224, 4294901760
        %v947 = vsub.f32 %v224, %v946
        %948 = vmatpush1.msra.mxu0 %v947
        %949 = vmatprep.subr.mxu0 0.0
        %950 = vmatpush1.msra.mxu0 0.0
        %951 = vmatprep.subr.mxu0 0.0
        %952 = vmatpush1.msra.mxu0 0.0
        %953 = vmatprep.subr.mxu0 0.0
        %954 = vmatpush1.msra.mxu0 0.0
        %955 = vmatprep.subr.mxu0 0.0
        %956 = vmatpush1.msra.mxu0 0.0
        %957 = vmatprep.subr.mxu0 0.0
        %958 = vmatpush1.msra.mxu0 0.0
        %959 = vmatprep.subr.mxu0 0.0
        %960 = vmatpush1.msra.mxu0 0.0
        %961 = vmatprep.subr.mxu0 0.0
        %962 = vmatpush1.msra.mxu0 0.0
        %963 = vmatprep.subr.mxu0 0.0
        %964 = vmatpush1.msra.mxu0 0.0
        %965 = vmatprep.subr.mxu0 0.0
        %966 = vmatpush1.msra.mxu0 0.0
        %967 = vmatprep.subr.mxu0 0.0
        %968 = vmatpush1.msra.mxu0 0.0
        %969 = vmatprep.subr.mxu0 0.0
        %970 = vmatpush1.msra.mxu0 0.0
        %971 = vmatprep.subr.mxu0 0.0
        %972 = vmatpush1.msra.mxu0 0.0
        %973 = vmatprep.subr.mxu0 0.0
        %974 = vmatpush1.msra.mxu0 0.0
        %975 = vmatprep.subr.mxu0 0.0
        %976 = vmatpush1.msra.mxu0 0.0
        %977 = vmatprep.subr.mxu0 0.0
        %978 = vmatpush1.msra.mxu0 0.0
        %979 = vmatprep.subr.mxu0 0.0
        %980 = vmatpush1.msra.mxu0 0.0
        %981 = vmatprep.subr.mxu0 0.0
        %982 = vmatpush1.msra.mxu0 0.0
        %983 = vmatprep.subr.mxu0 0.0
        %984 = vmatpush1.msra.mxu0 0.0
        %985 = vmatprep.subr.mxu0 0.0
        %986 = vmatpush1.msra.mxu0 0.0
        %987 = vmatprep.subr.mxu0 0.0
        %988 = vmatpush1.msra.mxu0 0.0
        %989 = vmatprep.subr.mxu0 0.0
        %990 = vmatpush1.msra.mxu0 0.0
        %991 = vmatprep.subr.mxu0 0.0
        %992 = vmatpush1.msra.mxu0 0.0
        %993 = vmatprep.subr.mxu0 0.0
        %994 = vmatpush1.msra.mxu0 0.0
        %995 = vmatprep.subr.mxu0 0.0
        %996 = vmatpush1.msra.mxu0 0.0
        %997 = vmatprep.subr.mxu0 0.0
        %998 = vmatpush1.msra.mxu0 0.0
        %999 = vmatprep.subr.mxu0 0.0
        %1000 = vmatpush1.msra.mxu0 0.0
        %1001 = vmatprep.subr.mxu0 0.0
        %1002 = vmatpush1.msra.mxu0 0.0
        %1003 = vmatprep.subr.mxu0 0.0
        %1004 = vmatpush1.msra.mxu0 0.0
        %1005 = vmatprep.subr.mxu0 0.0
        %1006 = vmatpush1.msra.mxu0 0.0
        %1007 = vmatprep.mubr.f32.mxu0 0.0
        %v1008 = vand.u32 %v228, 4294901760
        %v1009 = vsub.f32 %v228, %v1008
        %1010 = vmatmul.mubr.f32.gmra.mrb[0].mxu0 %v1009
        %v1011 = vpop.f32.mrb[0].mxu0
        %v1012 = vadd.f32 %v927, %v1011
        %v1013 = vpop.f32.mrb[0].mxu0
        %v1014 = vadd.f32 %v929, %v1013
        %1015 = vdwg.mxu0
        %v1016 = vand.u32 %v217, 4294901760
        %1017 = vmatprep.subr.mxu0 %v1016
        %v1018 = vand.u32 %v216, 4294901760
        %1019 = vmatpush1.msra.mxu0 %v1018
        %v1020 = vand.u32 %v221, 4294901760
        %1021 = vmatprep.subr.mxu0 %v1020
        %v1022 = vand.u32 %v220, 4294901760
        %1023 = vmatpush1.msra.mxu0 %v1022
        %v1024 = vand.u32 %v225, 4294901760
        %1025 = vmatprep.subr.mxu0 %v1024
        %v1026 = vand.u32 %v224, 4294901760
        %1027 = vmatpush1.msra.mxu0 %v1026
        %1028 = vmatprep.subr.mxu0 0.0
        %1029 = vmatpush1.msra.mxu0 0.0
        %1030 = vmatprep.subr.mxu0 0.0
        %1031 = vmatpush1.msra.mxu0 0.0
        %1032 = vmatprep.subr.mxu0 0.0
        %1033 = vmatpush1.msra.mxu0 0.0
        %1034 = vmatprep.subr.mxu0 0.0
        %1035 = vmatpush1.msra.mxu0 0.0
        %1036 = vmatprep.subr.mxu0 0.0
        %1037 = vmatpush1.msra.mxu0 0.0
        %1038 = vmatprep.subr.mxu0 0.0
        %1039 = vmatpush1.msra.mxu0 0.0
        %1040 = vmatprep.subr.mxu0 0.0
        %1041 = vmatpush1.msra.mxu0 0.0
        %1042 = vmatprep.subr.mxu0 0.0
        %1043 = vmatpush1.msra.mxu0 0.0
        %1044 = vmatprep.subr.mxu0 0.0
        %1045 = vmatpush1.msra.mxu0 0.0
        %1046 = vmatprep.subr.mxu0 0.0
        %1047 = vmatpush1.msra.mxu0 0.0
        %1048 = vmatprep.subr.mxu0 0.0
        %1049 = vmatpush1.msra.mxu0 0.0
        %1050 = vmatprep.subr.mxu0 0.0
        %1051 = vmatpush1.msra.mxu0 0.0
        %1052 = vmatprep.subr.mxu0 0.0
        %1053 = vmatpush1.msra.mxu0 0.0
        %1054 = vmatprep.subr.mxu0 0.0
        %1055 = vmatpush1.msra.mxu0 0.0
        %1056 = vmatprep.subr.mxu0 0.0
        %1057 = vmatpush1.msra.mxu0 0.0
        %1058 = vmatprep.subr.mxu0 0.0
        %1059 = vmatpush1.msra.mxu0 0.0
        %1060 = vmatprep.subr.mxu0 0.0
        %1061 = vmatpush1.msra.mxu0 0.0
        %1062 = vmatprep.subr.mxu0 0.0
        %1063 = vmatpush1.msra.mxu0 0.0
        %1064 = vmatprep.subr.mxu0 0.0
        %1065 = vmatpush1.msra.mxu0 0.0
        %1066 = vmatprep.subr.mxu0 0.0
        %1067 = vmatpush1.msra.mxu0 0.0
        %1068 = vmatprep.subr.mxu0 0.0
        %1069 = vmatpush1.msra.mxu0 0.0
        %1070 = vmatprep.subr.mxu0 0.0
        %1071 = vmatpush1.msra.mxu0 0.0
        %1072 = vmatprep.subr.mxu0 0.0
        %1073 = vmatpush1.msra.mxu0 0.0
        %1074 = vmatprep.subr.mxu0 0.0
        %1075 = vmatpush1.msra.mxu0 0.0
        %1076 = vmatprep.subr.mxu0 0.0
        %1077 = vmatpush1.msra.mxu0 0.0
        %1078 = vmatprep.subr.mxu0 0.0
        %1079 = vmatpush1.msra.mxu0 0.0
        %1080 = vmatprep.subr.mxu0 0.0
        %1081 = vmatpush1.msra.mxu0 0.0
        %1082 = vmatprep.subr.mxu0 0.0
        %1083 = vmatpush1.msra.mxu0 0.0
        %1084 = vmatprep.subr.mxu0 0.0
        %1085 = vmatpush1.msra.mxu0 0.0
        %1086 = vmatprep.mubr.f32.mxu0 0.0
        %v1087 = vand.u32 %v228, 4294901760
        %v1088 = vsub.f32 %v228, %v1087
        %v1089 = vand.u32 %v1088, 4294901760
        %1090 = vmatmul.mubr.f32.gmra.mrb[0].mxu0 %v1089
        %v1091 = vpop.f32.mrb[0].mxu0
        %v1092 = vadd.f32 %v1012, %v1091
        %v1093 = vpop.f32.mrb[0].mxu0
        %v1094 = vadd.f32 %v1014, %v1093
        %1095 = vdwg.mxu0
        %v1096 = vand.u32 %v217, 4294901760
        %v1097 = vsub.f32 %v217, %v1096
        %v1098 = vand.u32 %v1097, 4294901760
        %1099 = vmatprep.subr.mxu0 %v1098
        %v1100 = vand.u32 %v216, 4294901760
        %v1101 = vsub.f32 %v216, %v1100
        %v1102 = vand.u32 %v1101, 4294901760
        %1103 = vmatpush1.msra.mxu0 %v1102
        %v1104 = vand.u32 %v221, 4294901760
        %v1105 = vsub.f32 %v221, %v1104
        %v1106 = vand.u32 %v1105, 4294901760
        %1107 = vmatprep.subr.mxu0 %v1106
        %v1108 = vand.u32 %v220, 4294901760
        %v1109 = vsub.f32 %v220, %v1108
        %v1110 = vand.u32 %v1109, 4294901760
        %1111 = vmatpush1.msra.mxu0 %v1110
        %v1112 = vand.u32 %v225, 4294901760
        %v1113 = vsub.f32 %v225, %v1112
        %v1114 = vand.u32 %v1113, 4294901760
        %1115 = vmatprep.subr.mxu0 %v1114
        %v1116 = vand.u32 %v224, 4294901760
        %v1117 = vsub.f32 %v224, %v1116
        %v1118 = vand.u32 %v1117, 4294901760
        %1119 = vmatpush1.msra.mxu0 %v1118
        %1120 = vmatprep.subr.mxu0 0.0
        %1121 = vmatpush1.msra.mxu0 0.0
        %1122 = vmatprep.subr.mxu0 0.0
        %1123 = vmatpush1.msra.mxu0 0.0
        %1124 = vmatprep.subr.mxu0 0.0
        %1125 = vmatpush1.msra.mxu0 0.0
        %1126 = vmatprep.subr.mxu0 0.0
        %1127 = vmatpush1.msra.mxu0 0.0
        %1128 = vmatprep.subr.mxu0 0.0
        %1129 = vmatpush1.msra.mxu0 0.0
        %1130 = vmatprep.subr.mxu0 0.0
        %1131 = vmatpush1.msra.mxu0 0.0
        %1132 = vmatprep.subr.mxu0 0.0
        %1133 = vmatpush1.msra.mxu0 0.0
        %1134 = vmatprep.subr.mxu0 0.0
        %1135 = vmatpush1.msra.mxu0 0.0
        %1136 = vmatprep.subr.mxu0 0.0
        %1137 = vmatpush1.msra.mxu0 0.0
        %1138 = vmatprep.subr.mxu0 0.0
        %1139 = vmatpush1.msra.mxu0 0.0
        %1140 = vmatprep.subr.mxu0 0.0
        %1141 = vmatpush1.msra.mxu0 0.0
        %1142 = vmatprep.subr.mxu0 0.0
        %1143 = vmatpush1.msra.mxu0 0.0
        %1144 = vmatprep.subr.mxu0 0.0
        %1145 = vmatpush1.msra.mxu0 0.0
        %1146 = vmatprep.subr.mxu0 0.0
        %1147 = vmatpush1.msra.mxu0 0.0
        %1148 = vmatprep.subr.mxu0 0.0
        %1149 = vmatpush1.msra.mxu0 0.0
        %1150 = vmatprep.subr.mxu0 0.0
        %1151 = vmatpush1.msra.mxu0 0.0
        %1152 = vmatprep.subr.mxu0 0.0
        %1153 = vmatpush1.msra.mxu0 0.0
        %1154 = vmatprep.subr.mxu0 0.0
        %1155 = vmatpush1.msra.mxu0 0.0
        %1156 = vmatprep.subr.mxu0 0.0
        %1157 = vmatpush1.msra.mxu0 0.0
        %1158 = vmatprep.subr.mxu0 0.0
        %1159 = vmatpush1.msra.mxu0 0.0
        %1160 = vmatprep.subr.mxu0 0.0
        %1161 = vmatpush1.msra.mxu0 0.0
        %1162 = vmatprep.subr.mxu0 0.0
        %1163 = vmatpush1.msra.mxu0 0.0
        %1164 = vmatprep.subr.mxu0 0.0
        %1165 = vmatpush1.msra.mxu0 0.0
        %1166 = vmatprep.subr.mxu0 0.0
        %1167 = vmatpush1.msra.mxu0 0.0
        %1168 = vmatprep.subr.mxu0 0.0
        %1169 = vmatpush1.msra.mxu0 0.0
        %1170 = vmatprep.subr.mxu0 0.0
        %1171 = vmatpush1.msra.mxu0 0.0
        %1172 = vmatprep.subr.mxu0 0.0
        %1173 = vmatpush1.msra.mxu0 0.0
        %1174 = vmatprep.subr.mxu0 0.0
        %1175 = vmatpush1.msra.mxu0 0.0
        %1176 = vmatprep.subr.mxu0 0.0
        %1177 = vmatpush1.msra.mxu0 0.0
        %1178 = vmatprep.mubr.f32.mxu0 0.0
        %v1179 = vand.u32 %v228, 4294901760
        %1180 = vmatmul.mubr.f32.gmra.mrb[0].mxu0 %v1179
        %v1181 = vpop.f32.mrb[0].mxu0
        %v1182 = vadd.f32 %v1092, %v1181
        %v1183 = vpop.f32.mrb[0].mxu0
        %v1184 = vadd.f32 %v1094, %v1183
        %1185 = vdwg.mxu0
        %v1186 = vand.u32 %v217, 4294901760
        %1187 = vmatprep.subr.mxu0 %v1186
        %v1188 = vand.u32 %v216, 4294901760
        %1189 = vmatpush1.msra.mxu0 %v1188
        %v1190 = vand.u32 %v221, 4294901760
        %1191 = vmatprep.subr.mxu0 %v1190
        %v1192 = vand.u32 %v220, 4294901760
        %1193 = vmatpush1.msra.mxu0 %v1192
        %v1194 = vand.u32 %v225, 4294901760
        %1195 = vmatprep.subr.mxu0 %v1194
        %v1196 = vand.u32 %v224, 4294901760
        %1197 = vmatpush1.msra.mxu0 %v1196
        %1198 = vmatprep.subr.mxu0 0.0
        %1199 = vmatpush1.msra.mxu0 0.0
        %1200 = vmatprep.subr.mxu0 0.0
        %1201 = vmatpush1.msra.mxu0 0.0
        %1202 = vmatprep.subr.mxu0 0.0
        %1203 = vmatpush1.msra.mxu0 0.0
        %1204 = vmatprep.subr.mxu0 0.0
        %1205 = vmatpush1.msra.mxu0 0.0
        %1206 = vmatprep.subr.mxu0 0.0
        %1207 = vmatpush1.msra.mxu0 0.0
        %1208 = vmatprep.subr.mxu0 0.0
        %1209 = vmatpush1.msra.mxu0 0.0
        %1210 = vmatprep.subr.mxu0 0.0
        %1211 = vmatpush1.msra.mxu0 0.0
        %1212 = vmatprep.subr.mxu0 0.0
        %1213 = vmatpush1.msra.mxu0 0.0
        %1214 = vmatprep.subr.mxu0 0.0
        %1215 = vmatpush1.msra.mxu0 0.0
        %1216 = vmatprep.subr.mxu0 0.0
        %1217 = vmatpush1.msra.mxu0 0.0
        %1218 = vmatprep.subr.mxu0 0.0
        %1219 = vmatpush1.msra.mxu0 0.0
        %1220 = vmatprep.subr.mxu0 0.0
        %1221 = vmatpush1.msra.mxu0 0.0
        %1222 = vmatprep.subr.mxu0 0.0
        %1223 = vmatpush1.msra.mxu0 0.0
        %1224 = vmatprep.subr.mxu0 0.0
        %1225 = vmatpush1.msra.mxu0 0.0
        %1226 = vmatprep.subr.mxu0 0.0
        %1227 = vmatpush1.msra.mxu0 0.0
        %1228 = vmatprep.subr.mxu0 0.0
        %1229 = vmatpush1.msra.mxu0 0.0
        %1230 = vmatprep.subr.mxu0 0.0
        %1231 = vmatpush1.msra.mxu0 0.0
        %1232 = vmatprep.subr.mxu0 0.0
        %1233 = vmatpush1.msra.mxu0 0.0
        %1234 = vmatprep.subr.mxu0 0.0
        %1235 = vmatpush1.msra.mxu0 0.0
        %1236 = vmatprep.subr.mxu0 0.0
        %1237 = vmatpush1.msra.mxu0 0.0
        %1238 = vmatprep.subr.mxu0 0.0
        %1239 = vmatpush1.msra.mxu0 0.0
        %1240 = vmatprep.subr.mxu0 0.0
        %1241 = vmatpush1.msra.mxu0 0.0
        %1242 = vmatprep.subr.mxu0 0.0
        %1243 = vmatpush1.msra.mxu0 0.0
        %1244 = vmatprep.subr.mxu0 0.0
        %1245 = vmatpush1.msra.mxu0 0.0
        %1246 = vmatprep.subr.mxu0 0.0
        %1247 = vmatpush1.msra.mxu0 0.0
        %1248 = vmatprep.subr.mxu0 0.0
        %1249 = vmatpush1.msra.mxu0 0.0
        %1250 = vmatprep.subr.mxu0 0.0
        %1251 = vmatpush1.msra.mxu0 0.0
        %1252 = vmatprep.subr.mxu0 0.0
        %1253 = vmatpush1.msra.mxu0 0.0
        %1254 = vmatprep.subr.mxu0 0.0
        %1255 = vmatpush1.msra.mxu0 0.0
        %1256 = vmatprep.mubr.f32.mxu0 0.0
        %v1257 = vand.u32 %v228, 4294901760
        %1258 = vmatmul.mubr.f32.gmra.mrb[0].mxu0 %v1257
        %v1259 = vpop.f32.mrb[0].mxu0
        %v1260 = vadd.f32 %v1182, %v1259
        %v1261 = vpop.f32.mrb[0].mxu0
        %v1262 = vadd.f32 %v1184, %v1261
        %1263 = vdwg.mxu0
        %s1264 = scalar_lea.vmem [#allocation7], 1
        %v1265 = vld [vmem:[%s1264] ss:$4 sm:$0xf]
        %v1267 = vlaneseq
        %v1268 = vshrl.u32 %v1267, 7
        %v1269 = vsub.s32 0, %v1268
        %v1270 = vrot.slane %v1265, %v1269
        %v1271 = vlaneseq
        %v1272 = vshrl.u32 %v1271, 7
        %v1273 = vsub.s32 1, %v1272
        %v1274 = vrot.slane %v1265, %v1273
        %v1275 = vlaneseq
        %v1276 = vshrl.u32 %v1275, 7
        %v1277 = vsub.s32 2, %v1276
        %v1278 = vrot.slane %v1265, %v1277
        %v1279 = vlaneseq
        %v1280 = vshrl.u32 %v1279, 7
        %v1281 = vsub.s32 3, %v1280
        %v1282 = vrot.slane %v1265, %v1281
        %vm1287 = vcmp.ne.f32.partialorder %v1270, 0.0
        %vm1288 = vcmp.ne.f32.partialorder %v1274, 0.0
        %vm1289 = vcmp.ne.f32.partialorder %v1278, 0.0
        %vm1290 = vcmp.ne.f32.partialorder %v1282, 0.0
        %v1291 = vld [vmem:[#allocation7] ss:$4 sm:$0xf]
        %v1293 = vlaneseq
        %v1294 = vshrl.u32 %v1293, 7
        %v1295 = vsub.s32 0, %v1294
        %v1296 = vrot.slane %v1291, %v1295
        %v1297 = vlaneseq
        %v1298 = vshrl.u32 %v1297, 7
        %v1299 = vsub.s32 1, %v1298
        %v1300 = vrot.slane %v1291, %v1299
        %v1301 = vlaneseq
        %v1302 = vshrl.u32 %v1301, 7
        %v1303 = vsub.s32 2, %v1302
        %v1304 = vrot.slane %v1291, %v1303
        %v1305 = vlaneseq
        %v1306 = vshrl.u32 %v1305, 7
        %v1307 = vsub.s32 3, %v1306
        %v1308 = vrot.slane %v1291, %v1307
        %v1313 = vadd.f32 %v743, %v1296
        %v1314 = vadd.f32 %v745, %v1300
        %v1315 = vadd.f32 %v1260, %v1304
        %v1316 = vadd.f32 %v1262, %v1308
        %v1317 = vand.u32 2147483647, %v1313
        %vm1318 = vcmp.le.f32.partialorder %v1317, 0.7853982
        %vm1319 = vcmp.lt.s32.totalorder %v1313, 0
        %v1320 = vand.u32 %v1313, 2139095040
        %v1321 = vshrl.u32 %v1320, 23
        %v1322 = vsub.s32 %v1321, 127
        %v1323 = vand.u32 2147483647, %v1313
        %v1324 = vand.u32 %v1323, 8388607
        %v1325 = vor.u32 %v1324, 8388608
        %v1326 = vsub.s32 0, %v1325
        %v1327 = vadd.s32 %v1322, 1
        %vm1328 = vcmp.gt.s32.totalorder %v1327, 0
        %v1329 = vsel %vm1328, %v1327, 0
        %v1330 = vshrl.u32 %v1329, 5
        %v1331 = vand.u32 %v1329, 31
        %v1332 = vsub.s32 32, %v1331
        %v1333 = vshrl.u32 683565275, %v1332
        %v1334 = vshll.u32 683565275, %v1331
        %v1335 = vshrl.u32 2475754826, %v1332
        %v1336 = vor.u32 %v1334, %v1335
        %v1337 = vshll.u32 2475754826, %v1331
        %v1338 = vshrl.u32 2131351028, %v1332
        %v1339 = vor.u32 %v1337, %v1338
        %v1340 = vshll.u32 2131351028, %v1331
        %v1341 = vshrl.u32 2102212464, %v1332
        %v1342 = vor.u32 %v1340, %v1341
        %v1343 = vshll.u32 2102212464, %v1331
        %v1344 = vshrl.u32 920167782, %v1332
        %v1345 = vor.u32 %v1343, %v1344
        %v1346 = vshll.u32 920167782, %v1331
        %v1347 = vshrl.u32 1326507024, %v1332
        %v1348 = vor.u32 %v1346, %v1347
        %vm1349 = vcmp.lt.s32.totalorder %v1330, 1
        %vm1350 = vcmp.lt.s32.totalorder %v1330, 2
        %vm1351 = vcmp.lt.s32.totalorder %v1330, 3
        %vm1352 = vcmp.lt.s32.totalorder %v1330, 4
        %v1353 = vsel %vm1349, %v1333, %v1336
        %v1354 = vsel %vm1352, %v1342, 2102212464
        %v1355 = vsel %vm1351, %v1339, %v1354
        %v1356 = vsel %vm1350, %v1353, %v1355
        %v1357 = vsel %vm1349, %v1336, %v1339
        %v1358 = vsel %vm1352, %v1345, 920167782
        %v1359 = vsel %vm1351, %v1342, %v1358
        %v1360 = vsel %vm1350, %v1357, %v1359
        %v1361 = vsel %vm1349, %v1339, %v1342
        %v1362 = vsel %vm1352, %v1348, 1326507024
        %v1363 = vsel %vm1351, %v1345, %v1362
        %v1364 = vsel %vm1350, %v1361, %v1363
        %v1365 = vshll.u32 %v1325, 8
        %v1366 = vmul.u32.u64.compose %v1365, %v1364
        %v1367 = vextract.low.u32 %v1366
        %v1368 = vextract.high.u32 %v1366
        %v1369 = vmul.u32.u64.compose %v1365, %v1360
        %v1370 = vextract.low.u32 %v1369
        %v1371 = vextract.high.u32 %v1369
        %v1372 = vmul.u32 %v1365, %v1356
        %v1373 = vadd.s32 %v1368, %v1370
        %vm1374 = vc.u32 %v1368, %v1370
        %v1375 = vadd.s32 %v1371, 1
        %v1376 = vsel %vm1374, %v1375, %v1371
        %v1377 = vadd.s32 %v1372, %v1376
        %v1378 = vadd.s32 %v1377, 536870912
        %v1379 = vshrl.u32 %v1378, 30
        %v1380 = vshll.u32 %v1379, 30
        %v1381 = vsub.s32 %v1377, %v1380
        %vm1382 = vcmp.lt.s32.totalorder %v1381, 0
        %v1383 = vsub.s32 0, %v1381
        %v1384 = vsel %vm1382, %v1383, %v1381
        %v1385 = vclz %v1384
        %v1386 = vsub.s32 %v1385, 2
        %vm1387 = vcmp.gt.s32.totalorder 0, %v1386
        %v1388 = vsel %vm1387, 0, %v1386
        %v1389 = vsub.s32 32, %v1388
        %v1390 = vshll.u32 %v1381, %v1388
        %v1391 = vshrl.u32 %v1373, %v1389
        %v1392 = vor.u32 %v1390, %v1391
        %v1393 = vsub.s32 4294967266, %v1388
        %v1394 = vadd.s32 %v1393, 127
        %v1395 = vshll.u32 %v1394, 23
        %v1396 = vor.u32 4788187, %v1395
        %v1397 = vand.u32 2147483647, %v1396
        %v1399 = vcvt.s32.f32 %v1392
        %v1400 = vmul.f32 %v1399, %v1397
        %v1401 = vxor.u32 %v1400, 2147483648
        %v1402 = vsel %vm1319, %v1401, %v1400
        %v1403 = vsub.s32 4, %v1379
        %v1404 = vsel %vm1319, %v1403, %v1379
        %v1405 = vsel %vm1318, %v1313, %v1402
        %v1406 = vsel %vm1318, 0, %v1404
        %v1407 = vcosq.f32.pop %v1405
        %v1408 = vsinq.f32.pop %v1405
        %vm1409 = vweird.f32 %v1313
        %v1410 = vadd.s32 %v1406, 3
        %v1411 = vand.u32 %v1410, 3
        %vm1412 = vcmp.lt.s32.totalorder %v1411, 2
        %vm1413 = vcmp.eq.s32.totalorder %v1411, 0
        %v1414 = vxor.u32 %v1408, 2147483648
        %v1415 = vsel %vm1413, %v1407, %v1414
        %vm1416 = vcmp.eq.s32.totalorder %v1411, 2
        %v1417 = vxor.u32 %v1407, 2147483648
        %v1418 = vsel %vm1416, %v1417, %v1408
        %v1419 = vsel %vm1412, %v1415, %v1418
        %v1420 = vsel %vm1409, nan, %v1419
        %v1421 = vand.u32 2147483647, %v1314
        %vm1422 = vcmp.le.f32.partialorder %v1421, 0.7853982
        %vm1423 = vcmp.lt.s32.totalorder %v1314, 0
        %v1424 = vand.u32 %v1314, 2139095040
        %v1425 = vshrl.u32 %v1424, 23
        %v1426 = vsub.s32 %v1425, 127
        %v1427 = vand.u32 2147483647, %v1314
        %v1428 = vand.u32 %v1427, 8388607
        %v1429 = vor.u32 %v1428, 8388608
        %v1430 = vsub.s32 0, %v1429
        %v1431 = vadd.s32 %v1426, 1
        %vm1432 = vcmp.gt.s32.totalorder %v1431, 0
        %v1433 = vsel %vm1432, %v1431, 0
        %v1434 = vshrl.u32 %v1433, 5
        %v1435 = vand.u32 %v1433, 31
        %v1436 = vsub.s32 32, %v1435
        %v1437 = vshrl.u32 683565275, %v1436
        %v1438 = vshll.u32 683565275, %v1435
        %v1439 = vshrl.u32 2475754826, %v1436
        %v1440 = vor.u32 %v1438, %v1439
        %v1441 = vshll.u32 2475754826, %v1435
        %v1442 = vshrl.u32 2131351028, %v1436
        %v1443 = vor.u32 %v1441, %v1442
        %v1444 = vshll.u32 2131351028, %v1435
        %v1445 = vshrl.u32 2102212464, %v1436
        %v1446 = vor.u32 %v1444, %v1445
        %v1447 = vshll.u32 2102212464, %v1435
        %v1448 = vshrl.u32 920167782, %v1436
        %v1449 = vor.u32 %v1447, %v1448
        %v1450 = vshll.u32 920167782, %v1435
        %v1451 = vshrl.u32 1326507024, %v1436
        %v1452 = vor.u32 %v1450, %v1451
        %vm1453 = vcmp.lt.s32.totalorder %v1434, 1
        %vm1454 = vcmp.lt.s32.totalorder %v1434, 2
        %vm1455 = vcmp.lt.s32.totalorder %v1434, 3
        %vm1456 = vcmp.lt.s32.totalorder %v1434, 4
        %v1457 = vsel %vm1453, %v1437, %v1440
        %v1458 = vsel %vm1456, %v1446, 2102212464
        %v1459 = vsel %vm1455, %v1443, %v1458
        %v1460 = vsel %vm1454, %v1457, %v1459
        %v1461 = vsel %vm1453, %v1440, %v1443
        %v1462 = vsel %vm1456, %v1449, 920167782
        %v1463 = vsel %vm1455, %v1446, %v1462
        %v1464 = vsel %vm1454, %v1461, %v1463
        %v1465 = vsel %vm1453, %v1443, %v1446
        %v1466 = vsel %vm1456, %v1452, 1326507024
        %v1467 = vsel %vm1455, %v1449, %v1466
        %v1468 = vsel %vm1454, %v1465, %v1467
        %v1469 = vshll.u32 %v1429, 8
        %v1470 = vmul.u32.u64.compose %v1469, %v1468
        %v1471 = vextract.low.u32 %v1470
        %v1472 = vextract.high.u32 %v1470
        %v1473 = vmul.u32.u64.compose %v1469, %v1464
        %v1474 = vextract.low.u32 %v1473
        %v1475 = vextract.high.u32 %v1473
        %v1476 = vmul.u32 %v1469, %v1460
        %v1477 = vadd.s32 %v1472, %v1474
        %vm1478 = vc.u32 %v1472, %v1474
        %v1479 = vadd.s32 %v1475, 1
        %v1480 = vsel %vm1478, %v1479, %v1475
        %v1481 = vadd.s32 %v1476, %v1480
        %v1482 = vadd.s32 %v1481, 536870912
        %v1483 = vshrl.u32 %v1482, 30
        %v1484 = vshll.u32 %v1483, 30
        %v1485 = vsub.s32 %v1481, %v1484
        %vm1486 = vcmp.lt.s32.totalorder %v1485, 0
        %v1487 = vsub.s32 0, %v1485
        %v1488 = vsel %vm1486, %v1487, %v1485
        %v1489 = vclz %v1488
        %v1490 = vsub.s32 %v1489, 2
        %vm1491 = vcmp.gt.s32.totalorder 0, %v1490
        %v1492 = vsel %vm1491, 0, %v1490
        %v1493 = vsub.s32 32, %v1492
        %v1494 = vshll.u32 %v1485, %v1492
        %v1495 = vshrl.u32 %v1477, %v1493
        %v1496 = vor.u32 %v1494, %v1495
        %v1497 = vsub.s32 4294967266, %v1492
        %v1498 = vadd.s32 %v1497, 127
        %v1499 = vshll.u32 %v1498, 23
        %v1500 = vor.u32 4788187, %v1499
        %v1501 = vand.u32 2147483647, %v1500
        %v1503 = vcvt.s32.f32 %v1496
        %v1504 = vmul.f32 %v1503, %v1501
        %v1505 = vxor.u32 %v1504, 2147483648
        %v1506 = vsel %vm1423, %v1505, %v1504
        %v1507 = vsub.s32 4, %v1483
        %v1508 = vsel %vm1423, %v1507, %v1483
        %v1509 = vsel %vm1422, %v1314, %v1506
        %v1510 = vsel %vm1422, 0, %v1508
        %v1511 = vcosq.f32.pop %v1509
        %v1512 = vsinq.f32.pop %v1509
        %vm1513 = vweird.f32 %v1314
        %v1514 = vadd.s32 %v1510, 3
        %v1515 = vand.u32 %v1514, 3
        %vm1516 = vcmp.lt.s32.totalorder %v1515, 2
        %vm1517 = vcmp.eq.s32.totalorder %v1515, 0
        %v1518 = vxor.u32 %v1512, 2147483648
        %v1519 = vsel %vm1517, %v1511, %v1518
        %vm1520 = vcmp.eq.s32.totalorder %v1515, 2
        %v1521 = vxor.u32 %v1511, 2147483648
        %v1522 = vsel %vm1520, %v1521, %v1512
        %v1523 = vsel %vm1516, %v1519, %v1522
        %v1524 = vsel %vm1513, nan, %v1523
        %v1525 = vand.u32 2147483647, %v1315
        %vm1526 = vcmp.le.f32.partialorder %v1525, 0.7853982
        %vm1527 = vcmp.lt.s32.totalorder %v1315, 0
        %v1528 = vand.u32 %v1315, 2139095040
        %v1529 = vshrl.u32 %v1528, 23
        %v1530 = vsub.s32 %v1529, 127
        %v1531 = vand.u32 2147483647, %v1315
        %v1532 = vand.u32 %v1531, 8388607
        %v1533 = vor.u32 %v1532, 8388608
        %v1534 = vsub.s32 0, %v1533
        %v1535 = vadd.s32 %v1530, 1
        %vm1536 = vcmp.gt.s32.totalorder %v1535, 0
        %v1537 = vsel %vm1536, %v1535, 0
        %v1538 = vshrl.u32 %v1537, 5
        %v1539 = vand.u32 %v1537, 31
        %v1540 = vsub.s32 32, %v1539
        %v1541 = vshrl.u32 683565275, %v1540
        %v1542 = vshll.u32 683565275, %v1539
        %v1543 = vshrl.u32 2475754826, %v1540
        %v1544 = vor.u32 %v1542, %v1543
        %v1545 = vshll.u32 2475754826, %v1539
        %v1546 = vshrl.u32 2131351028, %v1540
        %v1547 = vor.u32 %v1545, %v1546
        %v1548 = vshll.u32 2131351028, %v1539
        %v1549 = vshrl.u32 2102212464, %v1540
        %v1550 = vor.u32 %v1548, %v1549
        %v1551 = vshll.u32 2102212464, %v1539
        %v1552 = vshrl.u32 920167782, %v1540
        %v1553 = vor.u32 %v1551, %v1552
        %v1554 = vshll.u32 920167782, %v1539
        %v1555 = vshrl.u32 1326507024, %v1540
        %v1556 = vor.u32 %v1554, %v1555
        %vm1557 = vcmp.lt.s32.totalorder %v1538, 1
        %vm1558 = vcmp.lt.s32.totalorder %v1538, 2
        %vm1559 = vcmp.lt.s32.totalorder %v1538, 3
        %vm1560 = vcmp.lt.s32.totalorder %v1538, 4
        %v1561 = vsel %vm1557, %v1541, %v1544
        %v1562 = vsel %vm1560, %v1550, 2102212464
        %v1563 = vsel %vm1559, %v1547, %v1562
        %v1564 = vsel %vm1558, %v1561, %v1563
        %v1565 = vsel %vm1557, %v1544, %v1547
        %v1566 = vsel %vm1560, %v1553, 920167782
        %v1567 = vsel %vm1559, %v1550, %v1566
        %v1568 = vsel %vm1558, %v1565, %v1567
        %v1569 = vsel %vm1557, %v1547, %v1550
        %v1570 = vsel %vm1560, %v1556, 1326507024
        %v1571 = vsel %vm1559, %v1553, %v1570
        %v1572 = vsel %vm1558, %v1569, %v1571
        %v1573 = vshll.u32 %v1533, 8
        %v1574 = vmul.u32.u64.compose %v1573, %v1572
        %v1575 = vextract.low.u32 %v1574
        %v1576 = vextract.high.u32 %v1574
        %v1577 = vmul.u32.u64.compose %v1573, %v1568
        %v1578 = vextract.low.u32 %v1577
        %v1579 = vextract.high.u32 %v1577
        %v1580 = vmul.u32 %v1573, %v1564
        %v1581 = vadd.s32 %v1576, %v1578
        %vm1582 = vc.u32 %v1576, %v1578
        %v1583 = vadd.s32 %v1579, 1
        %v1584 = vsel %vm1582, %v1583, %v1579
        %v1585 = vadd.s32 %v1580, %v1584
        %v1586 = vadd.s32 %v1585, 536870912
        %v1587 = vshrl.u32 %v1586, 30
        %v1588 = vshll.u32 %v1587, 30
        %v1589 = vsub.s32 %v1585, %v1588
        %vm1590 = vcmp.lt.s32.totalorder %v1589, 0
        %v1591 = vsub.s32 0, %v1589
        %v1592 = vsel %vm1590, %v1591, %v1589
        %v1593 = vclz %v1592
        %v1594 = vsub.s32 %v1593, 2
        %vm1595 = vcmp.gt.s32.totalorder 0, %v1594
        %v1596 = vsel %vm1595, 0, %v1594
        %v1597 = vsub.s32 32, %v1596
        %v1598 = vshll.u32 %v1589, %v1596
        %v1599 = vshrl.u32 %v1581, %v1597
        %v1600 = vor.u32 %v1598, %v1599
        %v1601 = vsub.s32 4294967266, %v1596
        %v1602 = vadd.s32 %v1601, 127
        %v1603 = vshll.u32 %v1602, 23
        %v1604 = vor.u32 4788187, %v1603
        %v1605 = vand.u32 2147483647, %v1604
        %v1607 = vcvt.s32.f32 %v1600
        %v1608 = vmul.f32 %v1607, %v1605
        %v1609 = vxor.u32 %v1608, 2147483648
        %v1610 = vsel %vm1527, %v1609, %v1608
        %v1611 = vsub.s32 4, %v1587
        %v1612 = vsel %vm1527, %v1611, %v1587
        %v1613 = vsel %vm1526, %v1315, %v1610
        %v1614 = vsel %vm1526, 0, %v1612
        %v1615 = vcosq.f32.pop %v1613
        %v1616 = vsinq.f32.pop %v1613
        %vm1617 = vweird.f32 %v1315
        %v1618 = vadd.s32 %v1614, 3
        %v1619 = vand.u32 %v1618, 3
        %vm1620 = vcmp.lt.s32.totalorder %v1619, 2
        %vm1621 = vcmp.eq.s32.totalorder %v1619, 0
        %v1622 = vxor.u32 %v1616, 2147483648
        %v1623 = vsel %vm1621, %v1615, %v1622
        %vm1624 = vcmp.eq.s32.totalorder %v1619, 2
        %v1625 = vxor.u32 %v1615, 2147483648
        %v1626 = vsel %vm1624, %v1625, %v1616
        %v1627 = vsel %vm1620, %v1623, %v1626
        %v1628 = vsel %vm1617, nan, %v1627
        %v1629 = vand.u32 2147483647, %v1316
        %vm1630 = vcmp.le.f32.partialorder %v1629, 0.7853982
        %vm1631 = vcmp.lt.s32.totalorder %v1316, 0
        %v1632 = vand.u32 %v1316, 2139095040
        %v1633 = vshrl.u32 %v1632, 23
        %v1634 = vsub.s32 %v1633, 127
        %v1635 = vand.u32 2147483647, %v1316
        %v1636 = vand.u32 %v1635, 8388607
        %v1637 = vor.u32 %v1636, 8388608
        %v1638 = vsub.s32 0, %v1637
        %v1639 = vadd.s32 %v1634, 1
        %vm1640 = vcmp.gt.s32.totalorder %v1639, 0
        %v1641 = vsel %vm1640, %v1639, 0
        %v1642 = vshrl.u32 %v1641, 5
        %v1643 = vand.u32 %v1641, 31
        %v1644 = vsub.s32 32, %v1643
        %v1645 = vshrl.u32 683565275, %v1644
        %v1646 = vshll.u32 683565275, %v1643
        %v1647 = vshrl.u32 2475754826, %v1644
        %v1648 = vor.u32 %v1646, %v1647
        %v1649 = vshll.u32 2475754826, %v1643
        %v1650 = vshrl.u32 2131351028, %v1644
        %v1651 = vor.u32 %v1649, %v1650
        %v1652 = vshll.u32 2131351028, %v1643
        %v1653 = vshrl.u32 2102212464, %v1644
        %v1654 = vor.u32 %v1652, %v1653
        %v1655 = vshll.u32 2102212464, %v1643
        %v1656 = vshrl.u32 920167782, %v1644
        %v1657 = vor.u32 %v1655, %v1656
        %v1658 = vshll.u32 920167782, %v1643
        %v1659 = vshrl.u32 1326507024, %v1644
        %v1660 = vor.u32 %v1658, %v1659
        %vm1661 = vcmp.lt.s32.totalorder %v1642, 1
        %vm1662 = vcmp.lt.s32.totalorder %v1642, 2
        %vm1663 = vcmp.lt.s32.totalorder %v1642, 3
        %vm1664 = vcmp.lt.s32.totalorder %v1642, 4
        %v1665 = vsel %vm1661, %v1645, %v1648
        %v1666 = vsel %vm1664, %v1654, 2102212464
        %v1667 = vsel %vm1663, %v1651, %v1666
        %v1668 = vsel %vm1662, %v1665, %v1667
        %v1669 = vsel %vm1661, %v1648, %v1651
        %v1670 = vsel %vm1664, %v1657, 920167782
        %v1671 = vsel %vm1663, %v1654, %v1670
        %v1672 = vsel %vm1662, %v1669, %v1671
        %v1673 = vsel %vm1661, %v1651, %v1654
        %v1674 = vsel %vm1664, %v1660, 1326507024
        %v1675 = vsel %vm1663, %v1657, %v1674
        %v1676 = vsel %vm1662, %v1673, %v1675
        %v1677 = vshll.u32 %v1637, 8
        %v1678 = vmul.u32.u64.compose %v1677, %v1676
        %v1679 = vextract.low.u32 %v1678
        %v1680 = vextract.high.u32 %v1678
        %v1681 = vmul.u32.u64.compose %v1677, %v1672
        %v1682 = vextract.low.u32 %v1681
        %v1683 = vextract.high.u32 %v1681
        %v1684 = vmul.u32 %v1677, %v1668
        %v1685 = vadd.s32 %v1680, %v1682
        %vm1686 = vc.u32 %v1680, %v1682
        %v1687 = vadd.s32 %v1683, 1
        %v1688 = vsel %vm1686, %v1687, %v1683
        %v1689 = vadd.s32 %v1684, %v1688
        %v1690 = vadd.s32 %v1689, 536870912
        %v1691 = vshrl.u32 %v1690, 30
        %v1692 = vshll.u32 %v1691, 30
        %v1693 = vsub.s32 %v1689, %v1692
        %vm1694 = vcmp.lt.s32.totalorder %v1693, 0
        %v1695 = vsub.s32 0, %v1693
        %v1696 = vsel %vm1694, %v1695, %v1693
        %v1697 = vclz %v1696
        %v1698 = vsub.s32 %v1697, 2
        %vm1699 = vcmp.gt.s32.totalorder 0, %v1698
        %v1700 = vsel %vm1699, 0, %v1698
        %v1701 = vsub.s32 32, %v1700
        %v1702 = vshll.u32 %v1693, %v1700
        %v1703 = vshrl.u32 %v1685, %v1701
        %v1704 = vor.u32 %v1702, %v1703
        %v1705 = vsub.s32 4294967266, %v1700
        %v1706 = vadd.s32 %v1705, 127
        %v1707 = vshll.u32 %v1706, 23
        %v1708 = vor.u32 4788187, %v1707
        %v1709 = vand.u32 2147483647, %v1708
        %v1711 = vcvt.s32.f32 %v1704
        %v1712 = vmul.f32 %v1711, %v1709
        %v1713 = vxor.u32 %v1712, 2147483648
        %v1714 = vsel %vm1631, %v1713, %v1712
        %v1715 = vsub.s32 4, %v1691
        %v1716 = vsel %vm1631, %v1715, %v1691
        %v1717 = vsel %vm1630, %v1316, %v1714
        %v1718 = vsel %vm1630, 0, %v1716
        %v1719 = vcosq.f32.pop %v1717
        %v1720 = vsinq.f32.pop %v1717
        %vm1721 = vweird.f32 %v1316
        %v1722 = vadd.s32 %v1718, 3
        %v1723 = vand.u32 %v1722, 3
        %vm1724 = vcmp.lt.s32.totalorder %v1723, 2
        %vm1725 = vcmp.eq.s32.totalorder %v1723, 0
        %v1726 = vxor.u32 %v1720, 2147483648
        %v1727 = vsel %vm1725, %v1719, %v1726
        %vm1728 = vcmp.eq.s32.totalorder %v1723, 2
        %v1729 = vxor.u32 %v1719, 2147483648
        %v1730 = vsel %vm1728, %v1729, %v1720
        %v1731 = vsel %vm1724, %v1727, %v1730
        %v1732 = vsel %vm1721, nan, %v1731
        %v1733 = vsel %vm1287, %v743, %v1420
        %v1734 = vsel %vm1288, %v745, %v1524
        %v1735 = vsel %vm1289, %v1260, %v1628
        %v1736 = vsel %vm1290, %v1262, %v1732
        %1737 = vst [vmem:[%s212] sm:$0xff] %v1733
        %1738 = vst [vmem:[%s212 + $0x8] sm:$0xff] %v1734
        %1739 = vst [vmem:[%s212 + $0x10] sm:$0xff] %v1735
        %vm1740 = vcmask 982016
        %1741 = vst.msk [vmem:[%s212 + $0x18] sm:$0xff] %vm1740, %v1736
        %s1742 = sand.u32 %s97, 1
        %s1743 = scalar_lea.sflag [#allocation4], %s1742
        %s1744 = sand.u32 %s97, 1
        %s1745 = smul.addr %s1744, 32
        %s1746 = scalar_lea.vmem [#allocation8], %s1745
        // Predicated region
        $region45: #{tpu_custom_call.1} parent=31 // pred_check
          %p1747 = pneg %p107
        $region46: #{tpu_custom_call.1} parent=31 // pred_check_branch
          %1749 = sbr.rel (%p1747) target = $region48
        $region47: #{tpu_custom_call.1} parent=31 // pred_region
          %s1751 = ssub.s32 512, 512
          %1752 = vsyncadd %s1743, %s1751
          %s1753 = smul.addr %s21, 4
          %s1754 = smul.addr %s1753, 128
          %s1755 = scalar_lea.hbm %s3, %s1754
          %s1757 = sshll.u32 %s1746, 4
          %s1758 = int_to_ptr.vmem [resolvable:$true] %s1757
          %1760 = dma.vmem_to_hbm [thread:$0]  %s1758, 512, %s1755, %s1743
        $region48: #{tpu_custom_call.1} parent=31 // pred_fallthru
          _
      $region32: #{tpu_custom_call.1} parent=5 // pred_fallthru
        _
      %p1761 = scmp.le.s32.totalorder 2, %s16
      // Predicated region
      $region49: #{tpu_custom_call.1} parent=5 // pred_check
        %p1762 = pneg %p1761
      $region50: #{tpu_custom_call.1} parent=5 // pred_check_branch
        %1764 = sbr.rel (%p1762) target = $region52
      $region51: #{tpu_custom_call.1} parent=5 // pred_region
        %s1765 = ssub.s32 %s16, 2
        // Predicated region
        $region53: #{tpu_custom_call.1} parent=51 // pred_check
          %p1766 = pneg %p113
        $region54: #{tpu_custom_call.1} parent=51 // pred_check_branch
          %1768 = sbr.rel (%p1766) target = $region56
        $region55: #{tpu_custom_call.1} parent=51 // pred_region
          %s1769 = sand.u32 %s98, 1
          %s1770 = scalar_lea.sflag [#allocation4], %s1769
          %s1771 = sand.u32 %s98, 1
          %s1772 = smul.addr %s1771, 32
          %s1773 = scalar_lea.vmem [#allocation8], %s1772
          %1774 = dma.done %s1770, 512
        $region56: #{tpu_custom_call.1} parent=51 // pred_fallthru
          _
      $region52: #{tpu_custom_call.1} parent=5 // pred_fallthru
        _
    $region6: #{tpu_custom_call.1} parent=1 // loop_footer
      %s20 = sadd.s32 1, %s16
    $region7: #{tpu_custom_call.1} parent=1 // loop_footer_branch
      %15 = sbr.rel target = $region3
    $region8: #{tpu_custom_call.1} parent=1 // loop_exit
      _
    %1775 = vsyncpa [#allocation3], 1
    %s1776 = scalar_lea.sflag [#allocation3], 1
    %1777 = vsyncpa %s1776, 1
    %1778 = vsyncpa [#allocation6], 1
    %1779 = vsyncpa [#allocation4], 1
    %s1780 = scalar_lea.sflag [#allocation4], 1
    %1781 = vsyncpa %s1780, 1

</llo_original>
